<compile_context>
chip_gen: v7x
topology: tpu7x:2x2x1
jax: 0.10.0
libtpu: 0.0.40
codegen_flags: <defaults>
</compile_context>

<pallas_src>
import functools

import jax
import jax.numpy as jnp
from jax.experimental import pallas as pl
from jax.experimental.pallas import tpu as pltpu


_VMEM_LIMIT = 32 * 1024 * 1024


def _ru(x, m):
    return ((x + m - 1) // m) * m


def _pick_tile(dim_padded, candidates):
    for t in candidates:
        if dim_padded % t == 0:
            return t
    return dim_padded


# ----------------------------------------------------------------------------
# Matmul kernel (conv backbone): bf16 x bf16 -> f32, fused bias (+ReLU)
# ----------------------------------------------------------------------------

@functools.lru_cache(maxsize=None)
def _get_mm_kernel(relu):
    def kernel(a_ref, b_ref, bias_ref, o_ref, acc_ref):
        @pl.when(pl.program_id(2) == 0)
        def _():
            acc_ref[...] = jnp.zeros_like(acc_ref)

        acc_ref[...] += jnp.dot(a_ref[...], b_ref[...],
                                preferred_element_type=jnp.float32)

        @pl.when(pl.program_id(2) == pl.num_programs(2) - 1)
        def _():
            r = acc_ref[...] + bias_ref[...]
            if relu:
                r = jnp.maximum(r, 0.0)
            o_ref[...] = r.astype(o_ref.dtype)

    return kernel


def pallas_matmul(a, b, bias, *, relu=False):
    """out = relu?(a @ b + bias);  a:(M,K) bf16, b:(K,N) bf16, bias:(N,) f32."""
    M, K = a.shape
    K2, N = b.shape
    assert K == K2

    Mp = _ru(M, 128) if M >= 128 else _ru(M, 8)
    TM = _pick_tile(Mp, (512, 256, 128))
    Np = _ru(N, 128) if N >= 128 else _ru(N, 8)
    TN = _pick_tile(Np, (256, 128))
    if K > 1024:
        Kp = _ru(K, 128)
        TK = _pick_tile(Kp, (512, 256, 128))
    else:
        Kp = _ru(K, 8)
        TK = Kp

    ap = a if (Mp == M and Kp == K) else jnp.pad(a, ((0, Mp - M), (0, Kp - K)))
    bp = b if (Kp == K and Np == N) else jnp.pad(b, ((0, Kp - K), (0, Np - N)))
    biasp = bias.reshape(1, N)
    if Np != N:
        biasp = jnp.pad(biasp, ((0, 0), (0, Np - N)))

    out = pl.pallas_call(
        _get_mm_kernel(bool(relu)),
        out_shape=jax.ShapeDtypeStruct((Mp, Np), jnp.float32),
        grid_spec=pltpu.PrefetchScalarGridSpec(
            num_scalar_prefetch=0,
            grid=(Mp // TM, Np // TN, Kp // TK),
            in_specs=[
                pl.BlockSpec((TM, TK), lambda i, j, k: (i, k)),
                pl.BlockSpec((TK, TN), lambda i, j, k: (k, j)),
                pl.BlockSpec((1, TN), lambda i, j, k: (0, j)),
            ],
            out_specs=pl.BlockSpec((TM, TN), lambda i, j, k: (i, j)),
            scratch_shapes=[pltpu.VMEM((TM, TN), jnp.float32)],
        ),
        compiler_params=pltpu.CompilerParams(
            dimension_semantics=("parallel", "parallel", "arbitrary"),
            vmem_limit_bytes=_VMEM_LIMIT),
    )(ap, bp, biasp)
    if Mp != M or Np != N:
        out = out[:M, :N]
    return out


@functools.partial(jax.jit, static_argnames=("k", "stride", "padding", "relu"))
def _conv2d_impl(x, w2d, b, *, k, stride, padding, relu):
    """PyTorch-equivalent Conv2d via im2col.  x: NHWC f32, w2d: (k*k*Cin, Cout) bf16."""
    N, H, W, Cin = x.shape
    Cout = w2d.shape[1]
    Ho = (H + 2 * padding - k) // stride + 1
    Wo = (W + 2 * padding - k) // stride + 1
    xb = x.astype(jnp.bfloat16)                     # bf16 operands for the MXU
    if k == 1 and stride == 1 and padding == 0:
        patches = xb.reshape(N * H * W, Cin)        # no im2col copy for 1x1
    else:
        # TODO(synk): replace the materialized im2col patches for 3x3/s1 convs
        # with a direct-conv Pallas kernel that folds the 9 taps into the K
        # grid axis (reads the padded NHWC input in place).
        xp = jnp.pad(xb, ((0, 0), (padding, padding), (padding, padding), (0, 0)))
        sl = []
        for ki in range(k):
            for kj in range(k):
                sl.append(xp[:, ki:ki + (Ho - 1) * stride + 1:stride,
                             kj:kj + (Wo - 1) * stride + 1:stride, :])
        patches = jnp.stack(sl, axis=3).reshape(N * Ho * Wo, k * k * Cin)
    out = pallas_matmul(patches, w2d, b, relu=relu)
    return out.reshape(N, Ho, Wo, Cout)


def conv2d(x, cp, *, stride=1, padding=0, relu=False):
    return _conv2d_impl(x, cp["w2d"], cp["b"], k=cp["k"],
                        stride=stride, padding=padding, relu=relu)


# ----------------------------------------------------------------------------
# BatchNorm (train-mode batch stats): tiled stats pass + tiled normalize pass
# (optionally fused with residual-add + ReLU).
# ----------------------------------------------------------------------------

def _bn_stats_kernel(x_ref, s_ref, q_ref):
    @pl.when(pl.program_id(0) == 0)
    def _():
        s_ref[...] = jnp.zeros_like(s_ref)
        q_ref[...] = jnp.zeros_like(q_ref)

    x = x_ref[...]
    s_ref[...] += jnp.sum(x, axis=0, keepdims=True)
    q_ref[...] += jnp.sum(x * x, axis=0, keepdims=True)


@functools.lru_cache(maxsize=None)
def _get_bn_apply_kernel(relu, has_res):
    if has_res:
        def kernel(x_ref, r_ref, s_ref, t_ref, o_ref):
            y = x_ref[...] * s_ref[...] + t_ref[...] + r_ref[...]
            if relu:
                y = jnp.maximum(y, 0.0)
            o_ref[...] = y
    else:
        def kernel(x_ref, s_ref, t_ref, o_ref):
            y = x_ref[...] * s_ref[...] + t_ref[...]
            if relu:
                y = jnp.maximum(y, 0.0)
            o_ref[...] = y
    return kernel


def _pick_rows(M, C, target_bytes=2 << 20):
    r = (target_bytes // (4 * C)) // 8 * 8
    r = max(8, min(2048, r))
    Mp = _ru(M, 8)
    if Mp <= r:
        return Mp, Mp
    return r, _ru(M, r)


@functools.partial(jax.jit, static_argnames=("relu",))
def _bn_impl(x2, gamma, beta, residual, *, relu):
    M, C = x2.shape
    BM, Mp = _pick_rows(M, C)
    xp = x2 if Mp == M else jnp.pad(x2, ((0, Mp - M), (0, 0)))
    grid = (Mp // BM,)

    sums, sqs = pl.pallas_call(
        _bn_stats_kernel,
        out_shape=(jax.ShapeDtypeStruct((1, C), jnp.float32),
                   jax.ShapeDtypeStruct((1, C), jnp.float32)),
        grid=grid,
        in_specs=[pl.BlockSpec((BM, C), lambda i: (i, 0))],
        out_specs=(pl.BlockSpec((1, C), lambda i: (0, 0)),
                   pl.BlockSpec((1, C), lambda i: (0, 0))),
        compiler_params=pltpu.CompilerParams(
            dimension_semantics=("arbitrary",),
            vmem_limit_bytes=_VMEM_LIMIT),
    )(xp)

    # Zero-padded rows contribute 0 to both sums; divide by the true M.
    mean = sums / M
    var = jnp.maximum(sqs / M - mean * mean, 0.0)   # guard cancellation
    inv = jax.lax.rsqrt(var + 1e-5)
    scale = gamma.reshape(1, C) * inv
    shift = beta.reshape(1, C) - mean * scale

    has_res = residual is not None
    ins = [xp]
    in_specs = [pl.BlockSpec((BM, C), lambda i: (i, 0))]
    if has_res:
        rp = residual if Mp == M else jnp.pad(residual, ((0, Mp - M), (0, 0)))
        ins.append(rp)
        in_specs.append(pl.BlockSpec((BM, C), lambda i: (i, 0)))
    ins += [scale, shift]
    in_specs += [pl.BlockSpec((1, C), lambda i: (0, 0)),
                 pl.BlockSpec((1, C), lambda i: (0, 0))]

    out = pl.pallas_call(
        _get_bn_apply_kernel(bool(relu), has_res),
        out_shape=jax.ShapeDtypeStruct((Mp, C), jnp.float32),
        grid=grid,
        in_specs=in_specs,
        out_specs=pl.BlockSpec((BM, C), lambda i: (i, 0)),
        compiler_params=pltpu.CompilerParams(
            dimension_semantics=("parallel",),
            vmem_limit_bytes=_VMEM_LIMIT),
    )(*ins)
    if Mp != M:
        out = out[:M]
    return out


def batchnorm(x, bn, *, relu=False, residual=None):
    N, H, W, C = x.shape
    res2 = None if residual is None else residual.reshape(N * H * W, C)
    y = _bn_impl(x.reshape(N * H * W, C), bn["g"], bn["b"], res2, relu=relu)
    return y.reshape(N, H, W, C)


# ----------------------------------------------------------------------------
# Fused MaxPool2d(kernel_size=3, stride=2, padding=1) on NHWC input.
# The padded input is pre-split (in the wrapper) into even- and odd-column
# planes so the kernel only performs contiguous slices (no strided ref
# indexing, which the HLO interpreter rejects).
# ----------------------------------------------------------------------------

@functools.lru_cache(maxsize=None)
def _get_maxpool_kernel(Wo):
    def kernel(ea_ref, eb_ref, oa_ref, ob_ref, o_ref):
        # ea: even-col rows [2h, 2h+2);  eb: even-col row 2h+2.
        # oa: odd-col  rows [2h, 2h+2);  ob: odd-col  row 2h+2.
        e = jnp.maximum(jnp.maximum(ea_ref[0, 0], ea_ref[0, 1]), eb_ref[0, 0])
        o = jnp.maximum(jnp.maximum(oa_ref[0, 0], oa_ref[0, 1]), ob_ref[0, 0])
        # output col j covers padded cols 2j (even[j]), 2j+1 (odd[j]), 2j+2 (even[j+1])
        m = jnp.maximum(jnp.maximum(e[:Wo, :], o[:Wo, :]), e[1:Wo + 1, :])
        o_ref[0, 0] = m
    return kernel


@jax.jit
def maxpool_3x3_s2(x):
    N, H, W, C = x.shape
    Ho = (H + 2 - 3) // 2 + 1
    Wo = (W + 2 - 3) // 2 + 1
    xp = jnp.pad(x, ((0, 0), (1, 1), (1, 1), (0, 0)),
                 constant_values=-jnp.inf)
    Hp, Wp = H + 2, W + 2
    We = Wo + 1          # even-column plane width (needs col 2*Wo)
    Wod = Wo             # odd-column plane width  (needs col 2*Wo-1)
    need = max(2 * We - 1, 2 * Wod)
    if Wp < need:
        xp = jnp.pad(xp, ((0, 0), (0, 0), (0, need - Wp), (0, 0)),
                     constant_values=-jnp.inf)
    x_even = xp[:, :, 0:2 * We:2, :]      # (N, Hp, We,  C) : padded cols 0,2,4,...
    x_odd = xp[:, :, 1:2 * Wod:2, :]      # (N, Hp, Wod, C) : padded cols 1,3,5,...
    return pl.pallas_call(
        _get_maxpool_kernel(Wo),
        out_shape=jax.ShapeDtypeStruct((N, Ho, Wo, C), jnp.float32),
        grid=(N, Ho),
        in_specs=[
            pl.BlockSpec((1, 2, We, C), lambda n, h: (n, h, 0, 0)),
            pl.BlockSpec((1, 1, We, C), lambda n, h: (n, 2 * h + 2, 0, 0)),
            pl.BlockSpec((1, 2, Wod, C), lambda n, h: (n, h, 0, 0)),
            pl.BlockSpec((1, 1, Wod, C), lambda n, h: (n, 2 * h + 2, 0, 0)),
        ],
        out_specs=pl.BlockSpec((1, 1, Wo, C), lambda n, h: (n, h, 0, 0)),
        compiler_params=pltpu.CompilerParams(
            dimension_semantics=("parallel", "arbitrary"),
            vmem_limit_bytes=_VMEM_LIMIT),
    )(x_even, x_even, x_odd, x_odd)


# ----------------------------------------------------------------------------
# UpsamplingBilinear2d(scale_factor=2)  (align_corners=True)
# Per-output-row gather + lerp kernel; row indices/weights derived from the
# grid index (no interpolation-matrix matmuls, no MXU waste).
# ----------------------------------------------------------------------------

@functools.lru_cache(maxsize=None)
def _get_lerp_kernel(L):
    denom = 2 * L - 1

    def kernel(x0_ref, x1_ref, o_ref):
        i = pl.program_id(1)
        num = i * (L - 1)
        w = (num % denom).astype(jnp.float32) / float(denom)
        a = x0_ref[0, 0]
        b = x1_ref[0, 0]
        o_ref[0, 0] = a + (b - a) * w

    return kernel


def _upsample_axis1(x):
    """(N, L, S, C) -> (N, 2L, S, C), bilinear align_corners along axis 1."""
    N, L, S, C = x.shape
    Lo = 2 * L
    denom = 2 * L - 1

    def im0(n, i):
        return (n, (i * (L - 1)) // denom, 0, 0)

    def im1(n, i):
        return (n, jnp.minimum((i * (L - 1)) // denom + 1, L - 1), 0, 0)

    return pl.pallas_call(
        _get_lerp_kernel(L),
        out_shape=jax.ShapeDtypeStruct((N, Lo, S, C), x.dtype),
        grid=(N, Lo),
        in_specs=[pl.BlockSpec((1, 1, S, C), im0),
                  pl.BlockSpec((1, 1, S, C), im1)],
        out_specs=pl.BlockSpec((1, 1, S, C), lambda n, i: (n, i, 0, 0)),
        compiler_params=pltpu.CompilerParams(
            dimension_semantics=("parallel", "arbitrary"),
            vmem_limit_bytes=_VMEM_LIMIT),
    )(x, x)


@jax.jit
def upsample_bilinear_2x(x):
    y = _upsample_axis1(x)          # H axis
    y = jnp.swapaxes(y, 1, 2)
    y = _upsample_axis1(y)          # W axis
    return jnp.swapaxes(y, 1, 2)


# ----------------------------------------------------------------------------
# Deterministic parameter construction (shapes from the module's __init__).
# Conv weights are stored pre-transformed to (k*k*Cin, Cout) bf16 (hoisted).
# ----------------------------------------------------------------------------

class _ParamGen:
    def __init__(self, key):
        self._key = key
        self._i = 0

    def _next(self):
        self._i += 1
        return jax.random.fold_in(self._key, self._i)

    def conv(self, cin, cout, k, bias=True):
        std = (2.0 / (cin * k * k)) ** 0.5   # kaiming-normal style
        w = std * jax.random.normal(self._next(), (cout, cin, k, k), jnp.float32)
        w2d = jnp.transpose(w, (2, 3, 1, 0)).reshape(k * k * cin, cout)
        return {"w2d": w2d.astype(jnp.bfloat16),
                "b": jnp.zeros((cout,), jnp.float32),
                "k": k, "cin": cin, "cout": cout}

    def bn(self, c):
        return {"g": jnp.ones((c,), jnp.float32),
                "b": jnp.zeros((c,), jnp.float32)}


def _make_layer(pg, inplanes, planes, blocks, stride):
    layer = []
    for bi in range(blocks):
        s = stride if bi == 0 else 1
        p = {
            "conv1": pg.conv(inplanes, planes, 1, bias=False),
            "bn1": pg.bn(planes),
            "conv2": pg.conv(planes, planes, 3, bias=False),
            "bn2": pg.bn(planes),
            "conv3": pg.conv(planes, planes * 4, 1, bias=False),
            "bn3": pg.bn(planes * 4),
            "stride": s,
        }
        if bi == 0 and (s != 1 or inplanes != planes * 4):
            p["down_conv"] = pg.conv(inplanes, planes * 4, 1, bias=False)
            p["down_bn"] = pg.bn(planes * 4)
        layer.append(p)
        inplanes = planes * 4
    return layer, inplanes


def make_unetres_params(key, num_classes=21, in_channels=3):
    pg = _ParamGen(key)
    P = {}
    P["conv_a"] = pg.conv(in_channels, 64, 3, bias=True)
    P["bn_a"] = pg.bn(64)
    P["conv_b"] = pg.conv(64, 64, 3, bias=True)
    P["bn_b"] = pg.bn(64)
    P["res_bn1"] = pg.bn(64)
    inp = 64
    P["layer1"], inp = _make_layer(pg, inp, 64, 3, 1)
    P["layer2"], inp = _make_layer(pg, inp, 128, 4, 2)
    P["layer3"], inp = _make_layer(pg, inp, 256, 6, 2)
    P["layer4"], inp = _make_layer(pg, inp, 512, 3, 2)
    P["up4"] = {"conv1": pg.conv(3072, 1024, 3), "conv2": pg.conv(1024, 1024, 3)}
    P["up3"] = {"conv1": pg.conv(1536, 512, 3), "conv2": pg.conv(512, 512, 3)}
    P["up2"] = {"conv1": pg.conv(768, 256, 3), "conv2": pg.conv(256, 256, 3)}
    P["up1"] = {"conv1": pg.conv(384, 64, 3), "conv2": pg.conv(64, 64, 3)}
    P["final"] = pg.conv(64, num_classes, 1)
    return P


# ----------------------------------------------------------------------------
# Forward pass
# ----------------------------------------------------------------------------

def bottleneck_forward(x, p):
    out = conv2d(x, p["conv1"], stride=1, padding=0)
    out = batchnorm(out, p["bn1"], relu=True)
    out = conv2d(out, p["conv2"], stride=p["stride"], padding=1)
    out = batchnorm(out, p["bn2"], relu=True)
    out = conv2d(out, p["conv3"], stride=1, padding=0)
    if "down_conv" in p:
        identity = conv2d(x, p["down_conv"], stride=p["stride"], padding=0)
        identity = batchnorm(identity, p["down_bn"], relu=False)
    else:
        identity = x
    # relu(bn3(out) + identity), with the add+relu fused into the BN kernel.
    return batchnorm(out, p["bn3"], relu=True, residual=identity)


def layer_forward(x, layer_params):
    for p in layer_params:
        x = bottleneck_forward(x, p)
    return x


def unetup_forward(x1, x2, p):
    x2u = upsample_bilinear_2x(x2)
    # TODO(synk): fuse this concat into the conv matmul's K axis (two A
    # operands) to avoid materializing the 1536/3072-channel concat tensors.
    x = jnp.concatenate([x1, x2u], axis=-1)
    x = conv2d(x, p["conv1"], stride=1, padding=1, relu=True)
    x = conv2d(x, p["conv2"], stride=1, padding=1, relu=True)
    return x


def _fold_duplicated_input(cp, c_dup):
    """conv(cat([y, y, rest]), W)  ==  conv(cat([y, rest]), W_folded)  (exact)."""
    k, cin, cout = cp["k"], cp["cin"], cp["cout"]
    w = cp["w2d"].astype(jnp.float32).reshape(k * k, cin, cout)
    w_f = jnp.concatenate([w[:, :c_dup] + w[:, c_dup:2 * c_dup],
                           w[:, 2 * c_dup:]], axis=1)
    new_cin = cin - c_dup
    return {"w2d": w_f.reshape(k * k * new_cin, cout).astype(jnp.bfloat16),
            "b": cp["b"], "k": k, "cin": new_cin, "cout": cout}


def unetres_forward(x_nchw, P):
    x = jnp.transpose(x_nchw, (0, 2, 3, 1)).astype(jnp.float32)   # NCHW -> NHWC
    # conv1 = self.conv(inputs)
    c = conv2d(x, P["conv_a"], stride=1, padding=1)
    c = batchnorm(c, P["bn_a"], relu=True)
    c = conv2d(c, P["conv_b"], stride=1, padding=1)
    conv1 = batchnorm(c, P["bn_b"], relu=True)
    # conv2 = relu(bn1(conv1))
    conv2_ = batchnorm(conv1, P["res_bn1"], relu=True)
    mp = maxpool_3x3_s2(conv2_)
    l1 = layer_forward(mp, P["layer1"])
    l2 = layer_forward(l1, P["layer2"])
    l3 = layer_forward(l2, P["layer3"])
    l4 = layer_forward(l3, P["layer4"])
    up4 = unetup_forward(l3, l4, P["up4"])
    up3 = unetup_forward(l2, up4, P["up3"])
    up2 = unetup_forward(l1, up3, P["up2"])
    # torch.cat([conv2, conv2], 1) is folded into up1.conv1's weight (exact),
    # so the duplicated 128-channel tensor is never materialized.
    up1_p = {"conv1": _fold_duplicated_input(P["up1"]["conv1"], 64),
             "conv2": P["up1"]["conv2"]}
    up1 = unetup_forward(conv2_, up2, up1_p)
    final = conv2d(up1, P["final"], stride=1, padding=0)
    return jnp.transpose(final, (0, 3, 1, 2))                     # back to NCHW


if __name__ == "__main__":
    # Small but non-degenerate: spatial must be divisible by 16.
    x = jax.random.normal(jax.random.PRNGKey(0), (1, 3, 32, 32), jnp.float32)
    params = make_unetres_params(jax.random.PRNGKey(1), num_classes=21, in_channels=3)
    out = unetres_forward(x, params)
    out = jax.block_until_ready(out)
    assert out.shape == (1, 21, 32, 32)
    assert bool(jnp.all(jnp.isfinite(out)))
    print("KERNEL_OK")
</pallas_src>

<mosaic_0001>
module attributes {stable_mosaic.version = 11 : i64} {
  func.func @kernel(%arg0: i32, %arg1: i32, %arg2: i32, %arg3: memref<512x32xbf16, #tpu.memory_space<vmem>>, %arg4: memref<32x64xbf16, #tpu.memory_space<vmem>>, %arg5: memref<1x64xf32, #tpu.memory_space<vmem>>, %arg6: memref<512x64xf32, #tpu.memory_space<vmem>>, %arg7: memref<512x64xf32, #tpu.memory_space<vmem>>) attributes {dimension_semantics = [#tpu.dimension_semantics<parallel>, #tpu.dimension_semantics<parallel>, #tpu.dimension_semantics<arbitrary>], iteration_bounds = array<i64: 2, 1, 1>, scalar_prefetch = 0 : i64, scratch_operands = 1 : i64, tpu.core_type = #tpu.core_type<tc>, window_params = [{transform_indices = @transform_0, window_bounds = array<i64: 512, 32>}, {transform_indices = @transform_1, window_bounds = array<i64: 32, 64>}, {transform_indices = @transform_2, window_bounds = array<i64: 1, 64>}, {transform_indices = @transform_3, window_bounds = array<i64: 512, 64>}]} {
    %c0_i32 = arith.constant 0 : i32
    %0 = arith.cmpi eq, %arg2, %c0_i32 : i32
    %1 = arith.extui %0 : i1 to i32
    %c0_i32_0 = arith.constant 0 : i32
    %2 = arith.cmpi ne, %1, %c0_i32_0 : i32
    scf.if %2 {
      %cst_10 = arith.constant 0.000000e+00 : f32
      %12 = vector.broadcast %cst_10 : f32 to vector<512x64xf32>
      %c0_11 = arith.constant 0 : index
      %c0_12 = arith.constant 0 : index
      %13 = vector.load %arg7[%c0_11, %c0_12] : memref<512x64xf32, #tpu.memory_space<vmem>>, vector<512x64xf32>
      tpu.vector_store %arg7[%c0_11, %c0_12], %12 {strides = array<i32>} : memref<512x64xf32, #tpu.memory_space<vmem>>, vector<512x64xf32>,
    } else {
    }
    %c0 = arith.constant 0 : index
    %c0_1 = arith.constant 0 : index
    %3 = vector.load %arg7[%c0, %c0_1] : memref<512x64xf32, #tpu.memory_space<vmem>>, vector<512x64xf32>
    %c0_2 = arith.constant 0 : index
    %c0_3 = arith.constant 0 : index
    %4 = vector.load %arg3[%c0_2, %c0_3] : memref<512x32xbf16, #tpu.memory_space<vmem>>, vector<512x32xbf16>
    %c0_4 = arith.constant 0 : index
    %c0_5 = arith.constant 0 : index
    %5 = vector.load %arg4[%c0_4, %c0_5] : memref<32x64xbf16, #tpu.memory_space<vmem>>, vector<32x64xbf16>
    %cst = arith.constant dense<0.000000e+00> : vector<512x64xf32>
    %6 = tpu.matmul %4, %5, %cst {dimension_numbers = #tpu.dot_dimension_numbers<[1], [0], [0], [1], [0, 0, 1, 1], [], []>} : vector<512x32xbf16>, vector<32x64xbf16>, vector<512x64xf32> -> vector<512x64xf32>
    %7 = arith.addf %3, %6 : vector<512x64xf32>
    %c0_6 = arith.constant 0 : index
    %c0_7 = arith.constant 0 : index
    %8 = vector.load %arg7[%c0_6, %c0_7] : memref<512x64xf32, #tpu.memory_space<vmem>>, vector<512x64xf32>
    tpu.vector_store %arg7[%c0_6, %c0_7], %7 {strides = array<i32>} : memref<512x64xf32, #tpu.memory_space<vmem>>, vector<512x64xf32>,
    %c0_i32_8 = arith.constant 0 : i32
    %9 = arith.cmpi eq, %arg2, %c0_i32_8 : i32
    %10 = arith.extui %9 : i1 to i32
    %c0_i32_9 = arith.constant 0 : i32
    %11 = arith.cmpi ne, %10, %c0_i32_9 : i32
    scf.if %11 {
      %c0_10 = arith.constant 0 : index
      %c0_11 = arith.constant 0 : index
      %12 = vector.load %arg7[%c0_10, %c0_11] : memref<512x64xf32, #tpu.memory_space<vmem>>, vector<512x64xf32>
      %c0_12 = arith.constant 0 : index
      %c0_13 = arith.constant 0 : index
      %13 = vector.load %arg5[%c0_12, %c0_13] : memref<1x64xf32, #tpu.memory_space<vmem>>, vector<1x64xf32>
      %14 = vector.broadcast %13 : vector<1x64xf32> to vector<512x64xf32>
      %15 = arith.addf %12, %14 : vector<512x64xf32>
      %c0_14 = arith.constant 0 : index
      %c0_15 = arith.constant 0 : index
      %16 = vector.load %arg6[%c0_14, %c0_15] : memref<512x64xf32, #tpu.memory_space<vmem>>, vector<512x64xf32>
      tpu.vector_store %arg6[%c0_14, %c0_15], %15 {strides = array<i32>} : memref<512x64xf32, #tpu.memory_space<vmem>>, vector<512x64xf32>,
    } else {
    }
    return
  }
  func.func @transform_0(%arg0: i32, %arg1: i32, %arg2: i32) -> (i32, i32) {
    %c0_i32 = arith.constant 0 : i32
    return %arg0, %arg2 : i32, i32
  }
  func.func @transform_1(%arg0: i32, %arg1: i32, %arg2: i32) -> (i32, i32) {
    %c0_i32 = arith.constant 0 : i32
    return %arg2, %arg1 : i32, i32
  }
  func.func @transform_2(%arg0: i32, %arg1: i32, %arg2: i32) -> (i32, i32) {
    %c0_i32 = arith.constant 0 : i32
    %c0_i32_0 = arith.constant 0 : i32
    return %c0_i32, %arg1 : i32, i32
  }
  func.func @transform_3(%arg0: i32, %arg1: i32, %arg2: i32) -> (i32, i32) {
    %c0_i32 = arith.constant 0 : i32
    return %arg0, %arg1 : i32, i32
  }
}

</mosaic_0001>

<llo_original>
// kernel: _conv2d_impl.1
$region0: #{_conv2d_impl.1}
  #allocation0 [shape = 'u32[]', space=smem, size = 0x4, offset = 0x4, fixed_abs, tag = 'smem constant byte address 0x4 - core index']
  #allocation1 [shape = 'u32[144,128]{1,0:T(1,128)}', space=vmem, size = 0x12000, scoped, tag = 'internal scratch']
  #allocation2 [shape = 'f32[512,64]{1,0:T(8,128)}', space=vmem, size = 0x40000, scoped, tag = 'scratch operand']
  %s0 = inlined_call_operand.vmem [shape: bf16[1024,32], index: 0, kind: input, shape index: {}]
  %s1 = inlined_call_operand.vmem [shape: bf16[32,64], index: 1, kind: input, shape index: {}]
  %s2 = inlined_call_operand.vmem [shape: f32[1,64], index: 2, kind: input, shape index: {}]
  %s3 = inlined_call_operand.hbm [shape: f32[1024,64], index: 3, kind: output, shape index: {}]
  %s4 = sld [smem:[#allocation0]]
  $region53: #{_conv2d_impl.1} parent=0
    _
  %s6 = ssub.s32 1, %s4
  %s7 = scalar_select 0, %s6, %s4
  $region1: #{_conv2d_impl.1} parent=0
    #allocation3 [shape = 'u8[524288]{0}', space=vmem, size = 0x80000, scoped, tag = 'output window, operand 0']
    #allocation4 [shape = 's32[2]{0}', space=sflag, size = 0x8, scoped, tag = 'scoped memory for _conv2d_impl.1']
    %8 = vsyncpa [#allocation4], 0
    %s9 = scalar_lea.sflag [#allocation4], 1
    %10 = vsyncpa %s9, 0
    loop: start=0, step=1, limit=4
    $region2: #{_conv2d_impl.1} parent=1 // loop_pre_header
      _
    $region3: #{_conv2d_impl.1} parent=1 // loop_header
      %s12 = sphi 0, %s16
      %p13 = scmp.ge.s32.totalorder %s12, 4
      %s19 = sphi 0, %s38
      %s20 = sphi 0, %s34
      %s21 = sphi 0, %s30
      %s22 = sphi 0, %s19
      %s23 = sphi 0, %s20
      %s24 = sphi 0, %s21
      %s25 = sphi 0, %s22
      %s26 = sphi 0, %s23
      %s27 = sphi 0, %s24
      %s43 = sphi 0, %s45
      %s46 = sphi 0, %s43
      %s47 = sphi 0, %s46
      %s63 = sphi 0, %s47
      %s71 = sphi 0, %s73
      %s74 = sphi 0, %s71
      %s75 = sphi 0, %s74
      %s91 = sphi 0, %s75
      %s97 = sphi 0, %s99
      %s100 = sphi 0, %s97
      %s101 = sphi 0, %s100
      %s117 = sphi 0, %s101
      %s125 = sphi 0, %s127
      %s128 = sphi 0, %s125
      %s129 = sphi 0, %s128
      %s145 = sphi 0, %s129
    $region4: #{_conv2d_impl.1} parent=1 // loop_header_branch
      %15 = sbr.rel (%p13) target = $region8
    $region5: #{_conv2d_impl.1} parent=1 // loop_body
      %s17 = ssub.s32 %s12, 1
      %s18 = ssub.s32 %s12, 2
      %s28 = sadd.s32 1, %s21
      %p29 = scmp.ge.s32.totalorder %s28, 1
      %s30 = scalar_select %p29, 0, %s28
      %s31 = sadd.s32 1, %s20
      %s32 = scalar_select %p29, %s31, %s20
      %p33 = scmp.ge.s32.totalorder %s32, 1
      %s34 = scalar_select %p33, 0, %s32
      %s35 = sadd.s32 1, %s19
      %s36 = scalar_select %p33, %s35, %s19
      %p37 = scmp.ge.s32.totalorder %s36, 2
      %s38 = scalar_select %p37, 0, %s36
      %s39 = ssub.s32 %s19, %s38
      %s40 = ssub.s32 %s21, %s30
      %s41 = sor.u32 %s39, %s40
      %p42 = scmp.eq.s32.totalorder %s41, 0
      %s44 = sadd.s32 %s43, 1
      %s45 = scalar_select %p42, %s43, %s44
      %p48 = pneg %p42
      %p49 = scmp.eq.s32.totalorder %s12, 1
      %p50 = por %p48, %p49
      %p51 = scmp.ne.s32.totalorder %s43, %s46
      %p52 = scmp.eq.s32.totalorder %s12, 0
      %p53 = por %p51, %p52
      %p54 = scmp.ne.s32.totalorder %s43, %s46
      %p55 = scmp.eq.s32.totalorder %s17, 1
      %p56 = por %p54, %p55
      %p57 = scmp.ne.s32.totalorder %s46, %s47
      %p58 = scmp.eq.s32.totalorder %s17, 0
      %p59 = por %p57, %p58
      %p60 = scmp.ne.s32.totalorder %s46, %s47
      %p61 = scmp.eq.s32.totalorder %s18, 1
      %p62 = por %p60, %p61
      %p64 = scmp.ne.s32.totalorder %s47, %s63
      %p65 = scmp.eq.s32.totalorder %s18, 0
      %p66 = por %p64, %p65
      %s67 = ssub.s32 %s21, %s30
      %s68 = ssub.s32 %s20, %s34
      %s69 = sor.u32 %s67, %s68
      %p70 = scmp.eq.s32.totalorder %s69, 0
      %s72 = sadd.s32 %s71, 1
      %s73 = scalar_select %p70, %s71, %s72
      %p76 = pneg %p70
      %p77 = scmp.eq.s32.totalorder %s12, 1
      %p78 = por %p76, %p77
      %p79 = scmp.ne.s32.totalorder %s71, %s74
      %p80 = scmp.eq.s32.totalorder %s12, 0
      %p81 = por %p79, %p80
      %p82 = scmp.ne.s32.totalorder %s71, %s74
      %p83 = scmp.eq.s32.totalorder %s17, 1
      %p84 = por %p82, %p83
      %p85 = scmp.ne.s32.totalorder %s74, %s75
      %p86 = scmp.eq.s32.totalorder %s17, 0
      %p87 = por %p85, %p86
      %p88 = scmp.ne.s32.totalorder %s74, %s75
      %p89 = scmp.eq.s32.totalorder %s18, 1
      %p90 = por %p88, %p89
      %p92 = scmp.ne.s32.totalorder %s75, %s91
      %p93 = scmp.eq.s32.totalorder %s18, 0
      %p94 = por %p92, %p93
      %s95 = ssub.s32 %s20, %s34
      %p96 = scmp.eq.s32.totalorder %s95, 0
      %s98 = sadd.s32 %s97, 1
      %s99 = scalar_select %p96, %s97, %s98
      %p102 = pneg %p96
      %p103 = scmp.eq.s32.totalorder %s12, 1
      %p104 = por %p102, %p103
      %p105 = scmp.ne.s32.totalorder %s97, %s100
      %p106 = scmp.eq.s32.totalorder %s12, 0
      %p107 = por %p105, %p106
      %p108 = scmp.ne.s32.totalorder %s97, %s100
      %p109 = scmp.eq.s32.totalorder %s17, 1
      %p110 = por %p108, %p109
      %p111 = scmp.ne.s32.totalorder %s100, %s101
      %p112 = scmp.eq.s32.totalorder %s17, 0
      %p113 = por %p111, %p112
      %p114 = scmp.ne.s32.totalorder %s100, %s101
      %p115 = scmp.eq.s32.totalorder %s18, 1
      %p116 = por %p114, %p115
      %p118 = scmp.ne.s32.totalorder %s101, %s117
      %p119 = scmp.eq.s32.totalorder %s18, 0
      %p120 = por %p118, %p119
      %s121 = ssub.s32 %s19, %s38
      %s122 = ssub.s32 %s20, %s34
      %s123 = sor.u32 %s121, %s122
      %p124 = scmp.eq.s32.totalorder %s123, 0
      %s126 = sadd.s32 %s125, 1
      %s127 = scalar_select %p124, %s125, %s126
      %p130 = pneg %p124
      %p131 = scmp.eq.s32.totalorder %s12, 1
      %p132 = por %p130, %p131
      %p133 = scmp.ne.s32.totalorder %s125, %s128
      %p134 = scmp.eq.s32.totalorder %s12, 0
      %p135 = por %p133, %p134
      %p136 = scmp.ne.s32.totalorder %s125, %s128
      %p137 = scmp.eq.s32.totalorder %s17, 1
      %p138 = por %p136, %p137
      %p139 = scmp.ne.s32.totalorder %s128, %s129
      %p140 = scmp.eq.s32.totalorder %s17, 0
      %p141 = por %p139, %p140
      %p142 = scmp.ne.s32.totalorder %s128, %s129
      %p143 = scmp.eq.s32.totalorder %s18, 1
      %p144 = por %p142, %p143
      %p146 = scmp.ne.s32.totalorder %s129, %s145
      %p147 = scmp.eq.s32.totalorder %s18, 0
      %p148 = por %p146, %p147
      %p149 = scmp.le.s32.totalorder 1, %s12
      %p150 = scmp.lt.s32.totalorder %s12, 3
      %p151 = pnand %p149, %p150
      %p152 = pneg %p151
      // Predicated region
      $region9: #{_conv2d_impl.1} parent=5 // pred_check
        _
      $region10: #{_conv2d_impl.1} parent=5 // pred_check_branch
        %154 = sbr.rel (%p151) target = $region12
      $region11: #{_conv2d_impl.1} parent=5 // pred_region
        %s155 = ssub.s32 %s12, 1
        // Predicated region
        $region13: #{_conv2d_impl.1} parent=11 // pred_check
          %p156 = pneg %p87
        $region14: #{_conv2d_impl.1} parent=11 // pred_check_branch
          %158 = sbr.rel (%p156) target = $region16
        $region15: #{_conv2d_impl.1} parent=11 // pred_region
          %s159 = smul.u32 4, %s24
          %p160 = scmp.lt.s32.totalorder %s159, 3
          %s161 = scalar_select %p160, %s159, 3
          %p162 = scmp.lt.s32.totalorder %s23, 0
          %s163 = scalar_select %p162, %s23, 0
          %s164 = sadd.s32 %s163, %s161
          %s165 = smul.addr %s164, 4
          %s166 = scalar_lea.vmem %s1, %s165
          %s167 = smul.u32 4, %s24
        $region16: #{_conv2d_impl.1} parent=11 // pred_fallthru
          _
        // Predicated region
        $region17: #{_conv2d_impl.1} parent=11 // pred_check
          %p168 = pneg %p113
        $region18: #{_conv2d_impl.1} parent=11 // pred_check_branch
          %170 = sbr.rel (%p168) target = $region20
        $region19: #{_conv2d_impl.1} parent=11 // pred_region
          %p171 = scmp.lt.s32.totalorder %s23, 0
          %s172 = scalar_select %p171, %s23, 0
          %s173 = scalar_lea.vmem %s2, %s172
        $region20: #{_conv2d_impl.1} parent=11 // pred_fallthru
          _
      $region12: #{_conv2d_impl.1} parent=5 // pred_fallthru
        _
      %p174 = scmp.lt.s32.totalorder %s12, 2
      // Predicated region
      $region21: #{_conv2d_impl.1} parent=5 // pred_check
        %p175 = pneg %p174
      $region22: #{_conv2d_impl.1} parent=5 // pred_check_branch
        %177 = sbr.rel (%p175) target = $region24
      $region23: #{_conv2d_impl.1} parent=5 // pred_region
        // Predicated region
        $region25: #{_conv2d_impl.1} parent=23 // pred_check
          %p178 = pneg %p53
        $region26: #{_conv2d_impl.1} parent=23 // pred_check_branch
          %180 = sbr.rel (%p178) target = $region28
        $region27: #{_conv2d_impl.1} parent=23 // pred_region
          %s181 = smul.u32 64, %s19
          %p182 = scmp.lt.s32.totalorder %s181, 127
          %s183 = scalar_select %p182, %s181, 127
          %p184 = scmp.lt.s32.totalorder %s21, 0
          %s185 = scalar_select %p184, %s21, 0
          %s186 = sadd.s32 %s185, %s183
          %s187 = smul.addr %s186, 4
          %s188 = scalar_lea.vmem %s0, %s187
          %s189 = smul.u32 64, %s19
        $region28: #{_conv2d_impl.1} parent=23 // pred_fallthru
          _
      $region24: #{_conv2d_impl.1} parent=5 // pred_fallthru
        _
      %p190 = scmp.le.s32.totalorder 1, %s12
      %p191 = scmp.lt.s32.totalorder %s12, 3
      %p192 = pnand %p190, %p191
      %p193 = pneg %p192
      // Predicated region
      $region29: #{_conv2d_impl.1} parent=5 // pred_check
        _
      $region30: #{_conv2d_impl.1} parent=5 // pred_check_branch
        %195 = sbr.rel (%p192) target = $region32
      $region31: #{_conv2d_impl.1} parent=5 // pred_region
        %s196 = ssub.s32 %s12, 1
        %s197 = smul.u32 64, %s22
        %p198 = scmp.lt.s32.totalorder %s197, 127
        %s199 = scalar_select %p198, %s197, 127
        %p200 = scmp.lt.s32.totalorder %s24, 0
        %s201 = scalar_select %p200, %s24, 0
        %s202 = sadd.s32 %s201, %s199
        %s203 = smul.addr %s202, 4
        %s204 = scalar_lea.vmem %s0, %s203
        %p205 = pneg %p59
        %p206 = pneg %p56
        %s207 = smul.u32 4, %s24
        %p208 = scmp.lt.s32.totalorder %s207, 3
        %s209 = scalar_select %p208, %s207, 3
        %p210 = scmp.lt.s32.totalorder %s23, 0
        %s211 = scalar_select %p210, %s23, 0
        %s212 = sadd.s32 %s211, %s209
        %s213 = smul.addr %s212, 4
        %s214 = scalar_lea.vmem %s1, %s213
        %p215 = pneg %p87
        %p216 = pneg %p84
        %p217 = scmp.lt.s32.totalorder %s23, 0
        %s218 = scalar_select %p217, %s23, 0
        %s219 = scalar_lea.vmem %s2, %s218
        %p220 = pneg %p113
        %p221 = pneg %p110
        %p222 = pneg %p141
        %p223 = pneg %p138
        %s224 = sand.u32 %s128, 1
        %s225 = scalar_lea.sflag [#allocation4], %s224
        %s226 = sand.u32 %s128, 1
        %s227 = smul.addr %s226, 512
        %s228 = scalar_lea.vmem [#allocation3], %s227
        %s229 = smul.u32 64, %s22
        %p230 = scmp.lt.s32.totalorder %s229, 127
        %s231 = scalar_select %p230, %s229, 127
        %p232 = scmp.lt.s32.totalorder %s24, 0
        %s233 = scalar_select %p232, %s24, 0
        %s234 = sadd.s32 %s233, %s231
        %s235 = smul.addr %s234, 4
        %s236 = scalar_lea.vmem %s0, %s235
        %s237 = smul.u32 64, %s22
        %s238 = smul.u32 4, %s24
        %p239 = scmp.lt.s32.totalorder %s238, 3
        %s240 = scalar_select %p239, %s238, 3
        %p241 = scmp.lt.s32.totalorder %s23, 0
        %s242 = scalar_select %p241, %s23, 0
        %s243 = sadd.s32 %s242, %s240
        %s244 = smul.addr %s243, 4
        %s245 = scalar_lea.vmem %s1, %s244
        %s246 = smul.u32 4, %s24
        %p247 = scmp.lt.s32.totalorder %s23, 0
        %s248 = scalar_select %p247, %s23, 0
        %s249 = scalar_lea.vmem %s2, %s248
        %s250 = smul.u32 64, %s22
        %p252 = scmp.eq.s32.totalorder %s24, 0
        // Predicated region
        $region33: #{_conv2d_impl.1} parent=31 // pred_check
          %p253 = pneg %p252
        $region34: #{_conv2d_impl.1} parent=31 // pred_check_branch
          %255 = sbr.rel (%p253) target = $region36
        $region35: #{_conv2d_impl.1} parent=31 // pred_region
          %vm256 = vcmask 523264
          %257 = vst.msk [vmem:[#allocation2] sm:$0xff] %vm256, 0.0
          %258 = vst.msk [vmem:[#allocation2 + $0x8] sm:$0xff] %vm256, 0.0
          %259 = vst.msk [vmem:[#allocation2 + $0x10] sm:$0xff] %vm256, 0.0
          %260 = vst.msk [vmem:[#allocation2 + $0x18] sm:$0xff] %vm256, 0.0
          %261 = vst.msk [vmem:[#allocation2 + $0x20] sm:$0xff] %vm256, 0.0
          %262 = vst.msk [vmem:[#allocation2 + $0x28] sm:$0xff] %vm256, 0.0
          %263 = vst.msk [vmem:[#allocation2 + $0x30] sm:$0xff] %vm256, 0.0
          %264 = vst.msk [vmem:[#allocation2 + $0x38] sm:$0xff] %vm256, 0.0
          %265 = vst.msk [vmem:[#allocation2 + $0x40] sm:$0xff] %vm256, 0.0
          %266 = vst.msk [vmem:[#allocation2 + $0x48] sm:$0xff] %vm256, 0.0
          %267 = vst.msk [vmem:[#allocation2 + $0x50] sm:$0xff] %vm256, 0.0
          %268 = vst.msk [vmem:[#allocation2 + $0x58] sm:$0xff] %vm256, 0.0
          %269 = vst.msk [vmem:[#allocation2 + $0x60] sm:$0xff] %vm256, 0.0
          %270 = vst.msk [vmem:[#allocation2 + $0x68] sm:$0xff] %vm256, 0.0
          %271 = vst.msk [vmem:[#allocation2 + $0x70] sm:$0xff] %vm256, 0.0
          %272 = vst.msk [vmem:[#allocation2 + $0x78] sm:$0xff] %vm256, 0.0
          %273 = vst.msk [vmem:[#allocation2 + $0x80] sm:$0xff] %vm256, 0.0
          %274 = vst.msk [vmem:[#allocation2 + $0x88] sm:$0xff] %vm256, 0.0
          %275 = vst.msk [vmem:[#allocation2 + $0x90] sm:$0xff] %vm256, 0.0
          %276 = vst.msk [vmem:[#allocation2 + $0x98] sm:$0xff] %vm256, 0.0
          %277 = vst.msk [vmem:[#allocation2 + $0xa0] sm:$0xff] %vm256, 0.0
          %278 = vst.msk [vmem:[#allocation2 + $0xa8] sm:$0xff] %vm256, 0.0
          %279 = vst.msk [vmem:[#allocation2 + $0xb0] sm:$0xff] %vm256, 0.0
          %280 = vst.msk [vmem:[#allocation2 + $0xb8] sm:$0xff] %vm256, 0.0
          %281 = vst.msk [vmem:[#allocation2 + $0xc0] sm:$0xff] %vm256, 0.0
          %282 = vst.msk [vmem:[#allocation2 + $0xc8] sm:$0xff] %vm256, 0.0
          %283 = vst.msk [vmem:[#allocation2 + $0xd0] sm:$0xff] %vm256, 0.0
          %284 = vst.msk [vmem:[#allocation2 + $0xd8] sm:$0xff] %vm256, 0.0
          %285 = vst.msk [vmem:[#allocation2 + $0xe0] sm:$0xff] %vm256, 0.0
          %286 = vst.msk [vmem:[#allocation2 + $0xe8] sm:$0xff] %vm256, 0.0
          %287 = vst.msk [vmem:[#allocation2 + $0xf0] sm:$0xff] %vm256, 0.0
          %288 = vst.msk [vmem:[#allocation2 + $0xf8] sm:$0xff] %vm256, 0.0
          %289 = vst.msk [vmem:[#allocation2 + $0x100] sm:$0xff] %vm256, 0.0
          %290 = vst.msk [vmem:[#allocation2 + $0x108] sm:$0xff] %vm256, 0.0
          %291 = vst.msk [vmem:[#allocation2 + $0x110] sm:$0xff] %vm256, 0.0
          %292 = vst.msk [vmem:[#allocation2 + $0x118] sm:$0xff] %vm256, 0.0
          %293 = vst.msk [vmem:[#allocation2 + $0x120] sm:$0xff] %vm256, 0.0
          %294 = vst.msk [vmem:[#allocation2 + $0x128] sm:$0xff] %vm256, 0.0
          %295 = vst.msk [vmem:[#allocation2 + $0x130] sm:$0xff] %vm256, 0.0
          %296 = vst.msk [vmem:[#allocation2 + $0x138] sm:$0xff] %vm256, 0.0
          %297 = vst.msk [vmem:[#allocation2 + $0x140] sm:$0xff] %vm256, 0.0
          %298 = vst.msk [vmem:[#allocation2 + $0x148] sm:$0xff] %vm256, 0.0
          %299 = vst.msk [vmem:[#allocation2 + $0x150] sm:$0xff] %vm256, 0.0
          %300 = vst.msk [vmem:[#allocation2 + $0x158] sm:$0xff] %vm256, 0.0
          %301 = vst.msk [vmem:[#allocation2 + $0x160] sm:$0xff] %vm256, 0.0
          %302 = vst.msk [vmem:[#allocation2 + $0x168] sm:$0xff] %vm256, 0.0
          %303 = vst.msk [vmem:[#allocation2 + $0x170] sm:$0xff] %vm256, 0.0
          %304 = vst.msk [vmem:[#allocation2 + $0x178] sm:$0xff] %vm256, 0.0
          %305 = vst.msk [vmem:[#allocation2 + $0x180] sm:$0xff] %vm256, 0.0
          %306 = vst.msk [vmem:[#allocation2 + $0x188] sm:$0xff] %vm256, 0.0
          %307 = vst.msk [vmem:[#allocation2 + $0x190] sm:$0xff] %vm256, 0.0
          %308 = vst.msk [vmem:[#allocation2 + $0x198] sm:$0xff] %vm256, 0.0
          %309 = vst.msk [vmem:[#allocation2 + $0x1a0] sm:$0xff] %vm256, 0.0
          %310 = vst.msk [vmem:[#allocation2 + $0x1a8] sm:$0xff] %vm256, 0.0
          %311 = vst.msk [vmem:[#allocation2 + $0x1b0] sm:$0xff] %vm256, 0.0
          %312 = vst.msk [vmem:[#allocation2 + $0x1b8] sm:$0xff] %vm256, 0.0
          %313 = vst.msk [vmem:[#allocation2 + $0x1c0] sm:$0xff] %vm256, 0.0
          %314 = vst.msk [vmem:[#allocation2 + $0x1c8] sm:$0xff] %vm256, 0.0
          %315 = vst.msk [vmem:[#allocation2 + $0x1d0] sm:$0xff] %vm256, 0.0
          %316 = vst.msk [vmem:[#allocation2 + $0x1d8] sm:$0xff] %vm256, 0.0
          %317 = vst.msk [vmem:[#allocation2 + $0x1e0] sm:$0xff] %vm256, 0.0
          %318 = vst.msk [vmem:[#allocation2 + $0x1e8] sm:$0xff] %vm256, 0.0
          %319 = vst.msk [vmem:[#allocation2 + $0x1f0] sm:$0xff] %vm256, 0.0
          %320 = vst.msk [vmem:[#allocation2 + $0x1f8] sm:$0xff] %vm256, 0.0
        $region36: #{_conv2d_impl.1} parent=31 // pred_fallthru
          _
        %v321 = vld [vmem:[#allocation2] sm:$0xff]
        %v322 = vld [vmem:[#allocation2 + $0x8] sm:$0xff]
        %v323 = vld [vmem:[#allocation2 + $0x10] sm:$0xff]
        %v324 = vld [vmem:[#allocation2 + $0x18] sm:$0xff]
        %v325 = vld [vmem:[#allocation2 + $0x20] sm:$0xff]
        %v326 = vld [vmem:[#allocation2 + $0x28] sm:$0xff]
        %v327 = vld [vmem:[#allocation2 + $0x30] sm:$0xff]
        %v328 = vld [vmem:[#allocation2 + $0x38] sm:$0xff]
        %v329 = vld [vmem:[#allocation2 + $0x40] sm:$0xff]
        %v330 = vld [vmem:[#allocation2 + $0x48] sm:$0xff]
        %v331 = vld [vmem:[#allocation2 + $0x50] sm:$0xff]
        %v332 = vld [vmem:[#allocation2 + $0x58] sm:$0xff]
        %v333 = vld [vmem:[#allocation2 + $0x60] sm:$0xff]
        %v334 = vld [vmem:[#allocation2 + $0x68] sm:$0xff]
        %v335 = vld [vmem:[#allocation2 + $0x70] sm:$0xff]
        %v336 = vld [vmem:[#allocation2 + $0x78] sm:$0xff]
        %v337 = vld [vmem:[#allocation2 + $0x80] sm:$0xff]
        %v338 = vld [vmem:[#allocation2 + $0x88] sm:$0xff]
        %v339 = vld [vmem:[#allocation2 + $0x90] sm:$0xff]
        %v340 = vld [vmem:[#allocation2 + $0x98] sm:$0xff]
        %v341 = vld [vmem:[#allocation2 + $0xa0] sm:$0xff]
        %v342 = vld [vmem:[#allocation2 + $0xa8] sm:$0xff]
        %v343 = vld [vmem:[#allocation2 + $0xb0] sm:$0xff]
        %v344 = vld [vmem:[#allocation2 + $0xb8] sm:$0xff]
        %v345 = vld [vmem:[#allocation2 + $0xc0] sm:$0xff]
        %v346 = vld [vmem:[#allocation2 + $0xc8] sm:$0xff]
        %v347 = vld [vmem:[#allocation2 + $0xd0] sm:$0xff]
        %v348 = vld [vmem:[#allocation2 + $0xd8] sm:$0xff]
        %v349 = vld [vmem:[#allocation2 + $0xe0] sm:$0xff]
        %v350 = vld [vmem:[#allocation2 + $0xe8] sm:$0xff]
        %v351 = vld [vmem:[#allocation2 + $0xf0] sm:$0xff]
        %v352 = vld [vmem:[#allocation2 + $0xf8] sm:$0xff]
        %v353 = vld [vmem:[#allocation2 + $0x100] sm:$0xff]
        %v354 = vld [vmem:[#allocation2 + $0x108] sm:$0xff]
        %v355 = vld [vmem:[#allocation2 + $0x110] sm:$0xff]
        %v356 = vld [vmem:[#allocation2 + $0x118] sm:$0xff]
        %v357 = vld [vmem:[#allocation2 + $0x120] sm:$0xff]
        %v358 = vld [vmem:[#allocation2 + $0x128] sm:$0xff]
        %v359 = vld [vmem:[#allocation2 + $0x130] sm:$0xff]
        %v360 = vld [vmem:[#allocation2 + $0x138] sm:$0xff]
        %v361 = vld [vmem:[#allocation2 + $0x140] sm:$0xff]
        %v362 = vld [vmem:[#allocation2 + $0x148] sm:$0xff]
        %v363 = vld [vmem:[#allocation2 + $0x150] sm:$0xff]
        %v364 = vld [vmem:[#allocation2 + $0x158] sm:$0xff]
        %v365 = vld [vmem:[#allocation2 + $0x160] sm:$0xff]
        %v366 = vld [vmem:[#allocation2 + $0x168] sm:$0xff]
        %v367 = vld [vmem:[#allocation2 + $0x170] sm:$0xff]
        %v368 = vld [vmem:[#allocation2 + $0x178] sm:$0xff]
        %v369 = vld [vmem:[#allocation2 + $0x180] sm:$0xff]
        %v370 = vld [vmem:[#allocation2 + $0x188] sm:$0xff]
        %v371 = vld [vmem:[#allocation2 + $0x190] sm:$0xff]
        %v372 = vld [vmem:[#allocation2 + $0x198] sm:$0xff]
        %v373 = vld [vmem:[#allocation2 + $0x1a0] sm:$0xff]
        %v374 = vld [vmem:[#allocation2 + $0x1a8] sm:$0xff]
        %v375 = vld [vmem:[#allocation2 + $0x1b0] sm:$0xff]
        %v376 = vld [vmem:[#allocation2 + $0x1b8] sm:$0xff]
        %v377 = vld [vmem:[#allocation2 + $0x1c0] sm:$0xff]
        %v378 = vld [vmem:[#allocation2 + $0x1c8] sm:$0xff]
        %v379 = vld [vmem:[#allocation2 + $0x1d0] sm:$0xff]
        %v380 = vld [vmem:[#allocation2 + $0x1d8] sm:$0xff]
        %v381 = vld [vmem:[#allocation2 + $0x1e0] sm:$0xff]
        %v382 = vld [vmem:[#allocation2 + $0x1e8] sm:$0xff]
        %v383 = vld [vmem:[#allocation2 + $0x1f0] sm:$0xff]
        %v384 = vld [vmem:[#allocation2 + $0x1f8] sm:$0xff]
        %v385 = vld [vmem:[%s236] sm:$0xf]
        %v386 = vld [vmem:[%s236 + $0x4] sm:$0xf]
        %v387 = vld [vmem:[%s236 + $0x8] sm:$0xf]
        %v388 = vld [vmem:[%s236 + $0xc] sm:$0xf]
        %v389 = vld [vmem:[%s236 + $0x10] sm:$0xf]
        %v390 = vld [vmem:[%s236 + $0x14] sm:$0xf]
        %v391 = vld [vmem:[%s236 + $0x18] sm:$0xf]
        %v392 = vld [vmem:[%s236 + $0x1c] sm:$0xf]
        %v393 = vld [vmem:[%s236 + $0x20] sm:$0xf]
        %v394 = vld [vmem:[%s236 + $0x24] sm:$0xf]
        %v395 = vld [vmem:[%s236 + $0x28] sm:$0xf]
        %v396 = vld [vmem:[%s236 + $0x2c] sm:$0xf]
        %v397 = vld [vmem:[%s236 + $0x30] sm:$0xf]
        %v398 = vld [vmem:[%s236 + $0x34] sm:$0xf]
        %v399 = vld [vmem:[%s236 + $0x38] sm:$0xf]
        %v400 = vld [vmem:[%s236 + $0x3c] sm:$0xf]
        %v401 = vld [vmem:[%s236 + $0x40] sm:$0xf]
        %v402 = vld [vmem:[%s236 + $0x44] sm:$0xf]
        %v403 = vld [vmem:[%s236 + $0x48] sm:$0xf]
        %v404 = vld [vmem:[%s236 + $0x4c] sm:$0xf]
        %v405 = vld [vmem:[%s236 + $0x50] sm:$0xf]
        %v406 = vld [vmem:[%s236 + $0x54] sm:$0xf]
        %v407 = vld [vmem:[%s236 + $0x58] sm:$0xf]
        %v408 = vld [vmem:[%s236 + $0x5c] sm:$0xf]
        %v409 = vld [vmem:[%s236 + $0x60] sm:$0xf]
        %v410 = vld [vmem:[%s236 + $0x64] sm:$0xf]
        %v411 = vld [vmem:[%s236 + $0x68] sm:$0xf]
        %v412 = vld [vmem:[%s236 + $0x6c] sm:$0xf]
        %v413 = vld [vmem:[%s236 + $0x70] sm:$0xf]
        %v414 = vld [vmem:[%s236 + $0x74] sm:$0xf]
        %v415 = vld [vmem:[%s236 + $0x78] sm:$0xf]
        %v416 = vld [vmem:[%s236 + $0x7c] sm:$0xf]
        %v417 = vld [vmem:[%s236 + $0x80] sm:$0xf]
        %v418 = vld [vmem:[%s236 + $0x84] sm:$0xf]
        %v419 = vld [vmem:[%s236 + $0x88] sm:$0xf]
        %v420 = vld [vmem:[%s236 + $0x8c] sm:$0xf]
        %v421 = vld [vmem:[%s236 + $0x90] sm:$0xf]
        %v422 = vld [vmem:[%s236 + $0x94] sm:$0xf]
        %v423 = vld [vmem:[%s236 + $0x98] sm:$0xf]
        %v424 = vld [vmem:[%s236 + $0x9c] sm:$0xf]
        %v425 = vld [vmem:[%s236 + $0xa0] sm:$0xf]
        %v426 = vld [vmem:[%s236 + $0xa4] sm:$0xf]
        %v427 = vld [vmem:[%s236 + $0xa8] sm:$0xf]
        %v428 = vld [vmem:[%s236 + $0xac] sm:$0xf]
        %v429 = vld [vmem:[%s236 + $0xb0] sm:$0xf]
        %v430 = vld [vmem:[%s236 + $0xb4] sm:$0xf]
        %v431 = vld [vmem:[%s236 + $0xb8] sm:$0xf]
        %v432 = vld [vmem:[%s236 + $0xbc] sm:$0xf]
        %v433 = vld [vmem:[%s236 + $0xc0] sm:$0xf]
        %v434 = vld [vmem:[%s236 + $0xc4] sm:$0xf]
        %v435 = vld [vmem:[%s236 + $0xc8] sm:$0xf]
        %v436 = vld [vmem:[%s236 + $0xcc] sm:$0xf]
        %v437 = vld [vmem:[%s236 + $0xd0] sm:$0xf]
        %v438 = vld [vmem:[%s236 + $0xd4] sm:$0xf]
        %v439 = vld [vmem:[%s236 + $0xd8] sm:$0xf]
        %v440 = vld [vmem:[%s236 + $0xdc] sm:$0xf]
        %v441 = vld [vmem:[%s236 + $0xe0] sm:$0xf]
        %v442 = vld [vmem:[%s236 + $0xe4] sm:$0xf]
        %v443 = vld [vmem:[%s236 + $0xe8] sm:$0xf]
        %v444 = vld [vmem:[%s236 + $0xec] sm:$0xf]
        %v445 = vld [vmem:[%s236 + $0xf0] sm:$0xf]
        %v446 = vld [vmem:[%s236 + $0xf4] sm:$0xf]
        %v447 = vld [vmem:[%s236 + $0xf8] sm:$0xf]
        %v448 = vld [vmem:[%s236 + $0xfc] sm:$0xf]
        %v449 = vld [vmem:[%s245] sm:$0xf]
        %v450 = vld [vmem:[%s245 + $0x4] sm:$0xf]
        %v451 = vld [vmem:[%s245 + $0x8] sm:$0xf]
        %v452 = vld [vmem:[%s245 + $0xc] sm:$0xf]
        %v517 = vunpack.c.l.b16 %v385
        %v518 = vunpack.c.l.b16 %v386
        %v519 = vunpack.c.l.b16 %v387
        %v520 = vunpack.c.l.b16 %v388
        %v521 = vunpack.c.l.b16 %v389
        %v522 = vunpack.c.l.b16 %v390
        %v523 = vunpack.c.l.b16 %v391
        %v524 = vunpack.c.l.b16 %v392
        %v525 = vunpack.c.l.b16 %v393
        %v526 = vunpack.c.l.b16 %v394
        %v527 = vunpack.c.l.b16 %v395
        %v528 = vunpack.c.l.b16 %v396
        %v529 = vunpack.c.l.b16 %v397
        %v530 = vunpack.c.l.b16 %v398
        %v531 = vunpack.c.l.b16 %v399
        %v532 = vunpack.c.l.b16 %v400
        %v533 = vunpack.c.l.b16 %v401
        %v534 = vunpack.c.l.b16 %v402
        %v535 = vunpack.c.l.b16 %v403
        %v536 = vunpack.c.l.b16 %v404
        %v537 = vunpack.c.l.b16 %v405
        %v538 = vunpack.c.l.b16 %v406
        %v539 = vunpack.c.l.b16 %v407
        %v540 = vunpack.c.l.b16 %v408
        %v541 = vunpack.c.l.b16 %v409
        %v542 = vunpack.c.l.b16 %v410
        %v543 = vunpack.c.l.b16 %v411
        %v544 = vunpack.c.l.b16 %v412
        %v545 = vunpack.c.l.b16 %v413
        %v546 = vunpack.c.l.b16 %v414
        %v547 = vunpack.c.l.b16 %v415
        %v548 = vunpack.c.l.b16 %v416
        %v549 = vunpack.c.l.b16 %v417
        %v550 = vunpack.c.l.b16 %v418
        %v551 = vunpack.c.l.b16 %v419
        %v552 = vunpack.c.l.b16 %v420
        %v553 = vunpack.c.l.b16 %v421
        %v554 = vunpack.c.l.b16 %v422
        %v555 = vunpack.c.l.b16 %v423
        %v556 = vunpack.c.l.b16 %v424
        %v557 = vunpack.c.l.b16 %v425
        %v558 = vunpack.c.l.b16 %v426
        %v559 = vunpack.c.l.b16 %v427
        %v560 = vunpack.c.l.b16 %v428
        %v561 = vunpack.c.l.b16 %v429
        %v562 = vunpack.c.l.b16 %v430
        %v563 = vunpack.c.l.b16 %v431
        %v564 = vunpack.c.l.b16 %v432
        %v565 = vunpack.c.l.b16 %v433
        %v566 = vunpack.c.l.b16 %v434
        %v567 = vunpack.c.l.b16 %v435
        %v568 = vunpack.c.l.b16 %v436
        %v569 = vunpack.c.l.b16 %v437
        %v570 = vunpack.c.l.b16 %v438
        %v571 = vunpack.c.l.b16 %v439
        %v572 = vunpack.c.l.b16 %v440
        %v573 = vunpack.c.l.b16 %v441
        %v574 = vunpack.c.l.b16 %v442
        %v575 = vunpack.c.l.b16 %v443
        %v576 = vunpack.c.l.b16 %v444
        %v577 = vunpack.c.l.b16 %v445
        %v578 = vunpack.c.l.b16 %v446
        %v579 = vunpack.c.l.b16 %v447
        %v580 = vunpack.c.l.b16 %v448
        %v581 = vpack.c.b16 %v518, %v517
        %v582 = vpack.c.b16 %v520, %v519
        %v583 = vpack.c.b16 %v522, %v521
        %v584 = vpack.c.b16 %v524, %v523
        %v585 = vpack.c.b16 %v526, %v525
        %v586 = vpack.c.b16 %v528, %v527
        %v587 = vpack.c.b16 %v530, %v529
        %v588 = vpack.c.b16 %v532, %v531
        %v589 = vpack.c.b16 %v534, %v533
        %v590 = vpack.c.b16 %v536, %v535
        %v591 = vpack.c.b16 %v538, %v537
        %v592 = vpack.c.b16 %v540, %v539
        %v593 = vpack.c.b16 %v542, %v541
        %v594 = vpack.c.b16 %v544, %v543
        %v595 = vpack.c.b16 %v546, %v545
        %v596 = vpack.c.b16 %v548, %v547
        %v597 = vpack.c.b16 %v550, %v549
        %v598 = vpack.c.b16 %v552, %v551
        %v599 = vpack.c.b16 %v554, %v553
        %v600 = vpack.c.b16 %v556, %v555
        %v601 = vpack.c.b16 %v558, %v557
        %v602 = vpack.c.b16 %v560, %v559
        %v603 = vpack.c.b16 %v562, %v561
        %v604 = vpack.c.b16 %v564, %v563
        %v605 = vpack.c.b16 %v566, %v565
        %v606 = vpack.c.b16 %v568, %v567
        %v607 = vpack.c.b16 %v570, %v569
        %v608 = vpack.c.b16 %v572, %v571
        %v609 = vpack.c.b16 %v574, %v573
        %v610 = vpack.c.b16 %v576, %v575
        %v611 = vpack.c.b16 %v578, %v577
        %v612 = vpack.c.b16 %v580, %v579
        %v617 = vunpack.c.l.b16 %v449
        %v618 = vunpack.c.l.b16 %v450
        %v619 = vunpack.c.l.b16 %v451
        %v620 = vunpack.c.l.b16 %v452
        %v621 = vpack.c.b16 %v618, %v617
        %v622 = vpack.c.b16 %v620, %v619
        %vm625 = vcmask 261120
        %v627 = vsel %vm625, %v581, 0
        %v630 = vsel %vm625, %v582, 0
        %v633 = vsel %vm625, %v583, 0
        %v636 = vsel %vm625, %v584, 0
        %v639 = vsel %vm625, %v585, 0
        %v642 = vsel %vm625, %v586, 0
        %v645 = vsel %vm625, %v587, 0
        %v648 = vsel %vm625, %v588, 0
        %v651 = vsel %vm625, %v589, 0
        %v654 = vsel %vm625, %v590, 0
        %v657 = vsel %vm625, %v591, 0
        %v660 = vsel %vm625, %v592, 0
        %v663 = vsel %vm625, %v593, 0
        %v666 = vsel %vm625, %v594, 0
        %v669 = vsel %vm625, %v595, 0
        %v672 = vsel %vm625, %v596, 0
        %v675 = vsel %vm625, %v597, 0
        %v678 = vsel %vm625, %v598, 0
        %v681 = vsel %vm625, %v599, 0
        %v684 = vsel %vm625, %v600, 0
        %v687 = vsel %vm625, %v601, 0
        %v690 = vsel %vm625, %v602, 0
        %v693 = vsel %vm625, %v603, 0
        %v696 = vsel %vm625, %v604, 0
        %v699 = vsel %vm625, %v605, 0
        %v702 = vsel %vm625, %v606, 0
        %v705 = vsel %vm625, %v607, 0
        %v708 = vsel %vm625, %v608, 0
        %v711 = vsel %vm625, %v609, 0
        %v714 = vsel %vm625, %v610, 0
        %v717 = vsel %vm625, %v611, 0
        %v720 = vsel %vm625, %v612, 0
        %722 = vmatprep.subr.bf16.mxu0 0
        %723 = vmatpush1.bf16.msra.mxu0 %v621
        %724 = vmatprep.subr.bf16.mxu0 0
        %725 = vmatpush1.bf16.msra.mxu0 %v622
        %726 = vmatprep.subr.bf16.mxu0 0
        %727 = vmatpush1.bf16.msra.mxu0 0
        %728 = vmatprep.subr.bf16.mxu0 0
        %729 = vmatpush1.bf16.msra.mxu0 0
        %730 = vmatprep.subr.bf16.mxu0 0
        %731 = vmatpush1.bf16.msra.mxu0 0
        %732 = vmatprep.subr.bf16.mxu0 0
        %733 = vmatpush1.bf16.msra.mxu0 0
        %734 = vmatprep.subr.bf16.mxu0 0
        %735 = vmatpush1.bf16.msra.mxu0 0
        %736 = vmatprep.subr.bf16.mxu0 0
        %737 = vmatpush1.bf16.msra.mxu0 0
        %738 = vmatprep.subr.bf16.mxu0 0
        %739 = vmatpush1.bf16.msra.mxu0 0
        %740 = vmatprep.subr.bf16.mxu0 0
        %741 = vmatpush1.bf16.msra.mxu0 0
        %742 = vmatprep.subr.bf16.mxu0 0
        %743 = vmatpush1.bf16.msra.mxu0 0
        %744 = vmatprep.subr.bf16.mxu0 0
        %745 = vmatpush1.bf16.msra.mxu0 0
        %746 = vmatprep.subr.bf16.mxu0 0
        %747 = vmatpush1.bf16.msra.mxu0 0
        %748 = vmatprep.subr.bf16.mxu0 0
        %749 = vmatpush1.bf16.msra.mxu0 0
        %750 = vmatprep.subr.bf16.mxu0 0
        %751 = vmatpush1.bf16.msra.mxu0 0
        %752 = vmatprep.subr.bf16.mxu0 0
        %753 = vmatpush1.bf16.msra.mxu0 0
        %754 = vmatprep.mubr.bf16.mxu0 0
        %755 = vmatmul.mubr.bf16.gmra.mrb[0].mxu0 %v627
        %v756 = vpop.f32.mrb[0].mxu0
        %v757 = vadd.f32 0.0, %v756
        %v758 = vpop.f32.mrb[0].mxu0
        %v759 = vpop.f32.mrb[0].mxu0
        %v760 = vadd.f32 0.0, %v759
        %v761 = vpop.f32.mrb[0].mxu0
        %762 = vmatprep.mubr.bf16.mxu0 0
        %763 = vmatmul.mubr.bf16.gmra.mrb[0].mxu0 %v630
        %v764 = vpop.f32.mrb[0].mxu0
        %v765 = vadd.f32 0.0, %v764
        %v766 = vpop.f32.mrb[0].mxu0
        %v767 = vpop.f32.mrb[0].mxu0
        %v768 = vadd.f32 0.0, %v767
        %v769 = vpop.f32.mrb[0].mxu0
        %770 = vmatprep.mubr.bf16.mxu0 0
        %771 = vmatmul.mubr.bf16.gmra.mrb[0].mxu0 %v633
        %v772 = vpop.f32.mrb[0].mxu0
        %v773 = vadd.f32 0.0, %v772
        %v774 = vpop.f32.mrb[0].mxu0
        %v775 = vpop.f32.mrb[0].mxu0
        %v776 = vadd.f32 0.0, %v775
        %v777 = vpop.f32.mrb[0].mxu0
        %778 = vmatprep.mubr.bf16.mxu0 0
        %779 = vmatmul.mubr.bf16.gmra.mrb[0].mxu0 %v636
        %v780 = vpop.f32.mrb[0].mxu0
        %v781 = vadd.f32 0.0, %v780
        %v782 = vpop.f32.mrb[0].mxu0
        %v783 = vpop.f32.mrb[0].mxu0
        %v784 = vadd.f32 0.0, %v783
        %v785 = vpop.f32.mrb[0].mxu0
        %786 = vmatprep.mubr.bf16.mxu0 0
        %787 = vmatmul.mubr.bf16.gmra.mrb[0].mxu0 %v639
        %v788 = vpop.f32.mrb[0].mxu0
        %v789 = vadd.f32 0.0, %v788
        %v790 = vpop.f32.mrb[0].mxu0
        %v791 = vpop.f32.mrb[0].mxu0
        %v792 = vadd.f32 0.0, %v791
        %v793 = vpop.f32.mrb[0].mxu0
        %794 = vmatprep.mubr.bf16.mxu0 0
        %795 = vmatmul.mubr.bf16.gmra.mrb[0].mxu0 %v642
        %v796 = vpop.f32.mrb[0].mxu0
        %v797 = vadd.f32 0.0, %v796
        %v798 = vpop.f32.mrb[0].mxu0
        %v799 = vpop.f32.mrb[0].mxu0
        %v800 = vadd.f32 0.0, %v799
        %v801 = vpop.f32.mrb[0].mxu0
        %802 = vmatprep.mubr.bf16.mxu0 0
        %803 = vmatmul.mubr.bf16.gmra.mrb[0].mxu0 %v645
        %v804 = vpop.f32.mrb[0].mxu0
        %v805 = vadd.f32 0.0, %v804
        %v806 = vpop.f32.mrb[0].mxu0
        %v807 = vpop.f32.mrb[0].mxu0
        %v808 = vadd.f32 0.0, %v807
        %v809 = vpop.f32.mrb[0].mxu0
        %810 = vmatprep.mubr.bf16.mxu0 0
        %811 = vmatmul.mubr.bf16.gmra.mrb[0].mxu0 %v648
        %v812 = vpop.f32.mrb[0].mxu0
        %v813 = vadd.f32 0.0, %v812
        %v814 = vpop.f32.mrb[0].mxu0
        %v815 = vpop.f32.mrb[0].mxu0
        %v816 = vadd.f32 0.0, %v815
        %v817 = vpop.f32.mrb[0].mxu0
        %818 = vmatprep.mubr.bf16.mxu0 0
        %819 = vmatmul.mubr.bf16.gmra.mrb[0].mxu0 %v651
        %v820 = vpop.f32.mrb[0].mxu0
        %v821 = vadd.f32 0.0, %v820
        %v822 = vpop.f32.mrb[0].mxu0
        %v823 = vpop.f32.mrb[0].mxu0
        %v824 = vadd.f32 0.0, %v823
        %v825 = vpop.f32.mrb[0].mxu0
        %826 = vmatprep.mubr.bf16.mxu0 0
        %827 = vmatmul.mubr.bf16.gmra.mrb[0].mxu0 %v654
        %v828 = vpop.f32.mrb[0].mxu0
        %v829 = vadd.f32 0.0, %v828
        %v830 = vpop.f32.mrb[0].mxu0
        %v831 = vpop.f32.mrb[0].mxu0
        %v832 = vadd.f32 0.0, %v831
        %v833 = vpop.f32.mrb[0].mxu0
        %834 = vmatprep.mubr.bf16.mxu0 0
        %835 = vmatmul.mubr.bf16.gmra.mrb[0].mxu0 %v657
        %v836 = vpop.f32.mrb[0].mxu0
        %v837 = vadd.f32 0.0, %v836
        %v838 = vpop.f32.mrb[0].mxu0
        %v839 = vpop.f32.mrb[0].mxu0
        %v840 = vadd.f32 0.0, %v839
        %v841 = vpop.f32.mrb[0].mxu0
        %842 = vmatprep.mubr.bf16.mxu0 0
        %843 = vmatmul.mubr.bf16.gmra.mrb[0].mxu0 %v660
        %v844 = vpop.f32.mrb[0].mxu0
        %v845 = vadd.f32 0.0, %v844
        %v846 = vpop.f32.mrb[0].mxu0
        %v847 = vpop.f32.mrb[0].mxu0
        %v848 = vadd.f32 0.0, %v847
        %v849 = vpop.f32.mrb[0].mxu0
        %850 = vmatprep.mubr.bf16.mxu0 0
        %851 = vmatmul.mubr.bf16.gmra.mrb[0].mxu0 %v663
        %v852 = vpop.f32.mrb[0].mxu0
        %v853 = vadd.f32 0.0, %v852
        %v854 = vpop.f32.mrb[0].mxu0
        %v855 = vpop.f32.mrb[0].mxu0
        %v856 = vadd.f32 0.0, %v855
        %v857 = vpop.f32.mrb[0].mxu0
        %858 = vmatprep.mubr.bf16.mxu0 0
        %859 = vmatmul.mubr.bf16.gmra.mrb[0].mxu0 %v666
        %v860 = vpop.f32.mrb[0].mxu0
        %v861 = vadd.f32 0.0, %v860
        %v862 = vpop.f32.mrb[0].mxu0
        %v863 = vpop.f32.mrb[0].mxu0
        %v864 = vadd.f32 0.0, %v863
        %v865 = vpop.f32.mrb[0].mxu0
        %866 = vmatprep.mubr.bf16.mxu0 0
        %867 = vmatmul.mubr.bf16.gmra.mrb[0].mxu0 %v669
        %v868 = vpop.f32.mrb[0].mxu0
        %v869 = vadd.f32 0.0, %v868
        %v870 = vpop.f32.mrb[0].mxu0
        %v871 = vpop.f32.mrb[0].mxu0
        %v872 = vadd.f32 0.0, %v871
        %v873 = vpop.f32.mrb[0].mxu0
        %874 = vmatprep.mubr.bf16.mxu0 0
        %875 = vmatmul.mubr.bf16.gmra.mrb[0].mxu0 %v672
        %v876 = vpop.f32.mrb[0].mxu0
        %v877 = vadd.f32 0.0, %v876
        %v878 = vpop.f32.mrb[0].mxu0
        %v879 = vpop.f32.mrb[0].mxu0
        %v880 = vadd.f32 0.0, %v879
        %v881 = vpop.f32.mrb[0].mxu0
        %882 = vmatprep.mubr.bf16.mxu0 0
        %883 = vmatmul.mubr.bf16.gmra.mrb[0].mxu0 %v675
        %v884 = vpop.f32.mrb[0].mxu0
        %v885 = vadd.f32 0.0, %v884
        %v886 = vpop.f32.mrb[0].mxu0
        %v887 = vpop.f32.mrb[0].mxu0
        %v888 = vadd.f32 0.0, %v887
        %v889 = vpop.f32.mrb[0].mxu0
        %890 = vmatprep.mubr.bf16.mxu0 0
        %891 = vmatmul.mubr.bf16.gmra.mrb[0].mxu0 %v678
        %v892 = vpop.f32.mrb[0].mxu0
        %v893 = vadd.f32 0.0, %v892
        %v894 = vpop.f32.mrb[0].mxu0
        %v895 = vpop.f32.mrb[0].mxu0
        %v896 = vadd.f32 0.0, %v895
        %v897 = vpop.f32.mrb[0].mxu0
        %898 = vmatprep.mubr.bf16.mxu0 0
        %899 = vmatmul.mubr.bf16.gmra.mrb[0].mxu0 %v681
        %v900 = vpop.f32.mrb[0].mxu0
        %v901 = vadd.f32 0.0, %v900
        %v902 = vpop.f32.mrb[0].mxu0
        %v903 = vpop.f32.mrb[0].mxu0
        %v904 = vadd.f32 0.0, %v903
        %v905 = vpop.f32.mrb[0].mxu0
        %906 = vmatprep.mubr.bf16.mxu0 0
        %907 = vmatmul.mubr.bf16.gmra.mrb[0].mxu0 %v684
        %v908 = vpop.f32.mrb[0].mxu0
        %v909 = vadd.f32 0.0, %v908
        %v910 = vpop.f32.mrb[0].mxu0
        %v911 = vpop.f32.mrb[0].mxu0
        %v912 = vadd.f32 0.0, %v911
        %v913 = vpop.f32.mrb[0].mxu0
        %914 = vmatprep.mubr.bf16.mxu0 0
        %915 = vmatmul.mubr.bf16.gmra.mrb[0].mxu0 %v687
        %v916 = vpop.f32.mrb[0].mxu0
        %v917 = vadd.f32 0.0, %v916
        %v918 = vpop.f32.mrb[0].mxu0
        %v919 = vpop.f32.mrb[0].mxu0
        %v920 = vadd.f32 0.0, %v919
        %v921 = vpop.f32.mrb[0].mxu0
        %922 = vmatprep.mubr.bf16.mxu0 0
        %923 = vmatmul.mubr.bf16.gmra.mrb[0].mxu0 %v690
        %v924 = vpop.f32.mrb[0].mxu0
        %v925 = vadd.f32 0.0, %v924
        %v926 = vpop.f32.mrb[0].mxu0
        %v927 = vpop.f32.mrb[0].mxu0
        %v928 = vadd.f32 0.0, %v927
        %v929 = vpop.f32.mrb[0].mxu0
        %930 = vmatprep.mubr.bf16.mxu0 0
        %931 = vmatmul.mubr.bf16.gmra.mrb[0].mxu0 %v693
        %v932 = vpop.f32.mrb[0].mxu0
        %v933 = vadd.f32 0.0, %v932
        %v934 = vpop.f32.mrb[0].mxu0
        %v935 = vpop.f32.mrb[0].mxu0
        %v936 = vadd.f32 0.0, %v935
        %v937 = vpop.f32.mrb[0].mxu0
        %938 = vmatprep.mubr.bf16.mxu0 0
        %939 = vmatmul.mubr.bf16.gmra.mrb[0].mxu0 %v696
        %v940 = vpop.f32.mrb[0].mxu0
        %v941 = vadd.f32 0.0, %v940
        %v942 = vpop.f32.mrb[0].mxu0
        %v943 = vpop.f32.mrb[0].mxu0
        %v944 = vadd.f32 0.0, %v943
        %v945 = vpop.f32.mrb[0].mxu0
        %946 = vmatprep.mubr.bf16.mxu0 0
        %947 = vmatmul.mubr.bf16.gmra.mrb[0].mxu0 %v699
        %v948 = vpop.f32.mrb[0].mxu0
        %v949 = vadd.f32 0.0, %v948
        %v950 = vpop.f32.mrb[0].mxu0
        %v951 = vpop.f32.mrb[0].mxu0
        %v952 = vadd.f32 0.0, %v951
        %v953 = vpop.f32.mrb[0].mxu0
        %954 = vmatprep.mubr.bf16.mxu0 0
        %955 = vmatmul.mubr.bf16.gmra.mrb[0].mxu0 %v702
        %v956 = vpop.f32.mrb[0].mxu0
        %v957 = vadd.f32 0.0, %v956
        %v958 = vpop.f32.mrb[0].mxu0
        %v959 = vpop.f32.mrb[0].mxu0
        %v960 = vadd.f32 0.0, %v959
        %v961 = vpop.f32.mrb[0].mxu0
        %962 = vmatprep.mubr.bf16.mxu0 0
        %963 = vmatmul.mubr.bf16.gmra.mrb[0].mxu0 %v705
        %v964 = vpop.f32.mrb[0].mxu0
        %v965 = vadd.f32 0.0, %v964
        %v966 = vpop.f32.mrb[0].mxu0
        %v967 = vpop.f32.mrb[0].mxu0
        %v968 = vadd.f32 0.0, %v967
        %v969 = vpop.f32.mrb[0].mxu0
        %970 = vmatprep.mubr.bf16.mxu0 0
        %971 = vmatmul.mubr.bf16.gmra.mrb[0].mxu0 %v708
        %v972 = vpop.f32.mrb[0].mxu0
        %v973 = vadd.f32 0.0, %v972
        %v974 = vpop.f32.mrb[0].mxu0
        %v975 = vpop.f32.mrb[0].mxu0
        %v976 = vadd.f32 0.0, %v975
        %v977 = vpop.f32.mrb[0].mxu0
        %978 = vmatprep.mubr.bf16.mxu0 0
        %979 = vmatmul.mubr.bf16.gmra.mrb[0].mxu0 %v711
        %v980 = vpop.f32.mrb[0].mxu0
        %v981 = vadd.f32 0.0, %v980
        %v982 = vpop.f32.mrb[0].mxu0
        %v983 = vpop.f32.mrb[0].mxu0
        %v984 = vadd.f32 0.0, %v983
        %v985 = vpop.f32.mrb[0].mxu0
        %986 = vmatprep.mubr.bf16.mxu0 0
        %987 = vmatmul.mubr.bf16.gmra.mrb[0].mxu0 %v714
        %v988 = vpop.f32.mrb[0].mxu0
        %v989 = vadd.f32 0.0, %v988
        %v990 = vpop.f32.mrb[0].mxu0
        %v991 = vpop.f32.mrb[0].mxu0
        %v992 = vadd.f32 0.0, %v991
        %v993 = vpop.f32.mrb[0].mxu0
        %994 = vmatprep.mubr.bf16.mxu0 0
        %995 = vmatmul.mubr.bf16.gmra.mrb[0].mxu0 %v717
        %v996 = vpop.f32.mrb[0].mxu0
        %v997 = vadd.f32 0.0, %v996
        %v998 = vpop.f32.mrb[0].mxu0
        %v999 = vpop.f32.mrb[0].mxu0
        %v1000 = vadd.f32 0.0, %v999
        %v1001 = vpop.f32.mrb[0].mxu0
        %1002 = vmatprep.mubr.bf16.mxu0 0
        %1003 = vmatmul.mubr.bf16.gmra.mrb[0].mxu0 %v720
        %v1004 = vpop.f32.mrb[0].mxu0
        %v1005 = vadd.f32 0.0, %v1004
        %v1006 = vpop.f32.mrb[0].mxu0
        %v1007 = vpop.f32.mrb[0].mxu0
        %v1008 = vadd.f32 0.0, %v1007
        %v1009 = vpop.f32.mrb[0].mxu0
        %1010 = vdwg.mxu0
        %v1011 = vadd.f32 %v321, %v757
        %v1012 = vadd.f32 %v322, %v760
        %v1013 = vadd.f32 %v323, %v765
        %v1014 = vadd.f32 %v324, %v768
        %v1015 = vadd.f32 %v325, %v773
        %v1016 = vadd.f32 %v326, %v776
        %v1017 = vadd.f32 %v327, %v781
        %v1018 = vadd.f32 %v328, %v784
        %v1019 = vadd.f32 %v329, %v789
        %v1020 = vadd.f32 %v330, %v792
        %v1021 = vadd.f32 %v331, %v797
        %v1022 = vadd.f32 %v332, %v800
        %v1023 = vadd.f32 %v333, %v805
        %v1024 = vadd.f32 %v334, %v808
        %v1025 = vadd.f32 %v335, %v813
        %v1026 = vadd.f32 %v336, %v816
        %v1027 = vadd.f32 %v337, %v821
        %v1028 = vadd.f32 %v338, %v824
        %v1029 = vadd.f32 %v339, %v829
        %v1030 = vadd.f32 %v340, %v832
        %v1031 = vadd.f32 %v341, %v837
        %v1032 = vadd.f32 %v342, %v840
        %v1033 = vadd.f32 %v343, %v845
        %v1034 = vadd.f32 %v344, %v848
        %v1035 = vadd.f32 %v345, %v853
        %v1036 = vadd.f32 %v346, %v856
        %v1037 = vadd.f32 %v347, %v861
        %v1038 = vadd.f32 %v348, %v864
        %v1039 = vadd.f32 %v349, %v869
        %v1040 = vadd.f32 %v350, %v872
        %v1041 = vadd.f32 %v351, %v877
        %v1042 = vadd.f32 %v352, %v880
        %v1043 = vadd.f32 %v353, %v885
        %v1044 = vadd.f32 %v354, %v888
        %v1045 = vadd.f32 %v355, %v893
        %v1046 = vadd.f32 %v356, %v896
        %v1047 = vadd.f32 %v357, %v901
        %v1048 = vadd.f32 %v358, %v904
        %v1049 = vadd.f32 %v359, %v909
        %v1050 = vadd.f32 %v360, %v912
        %v1051 = vadd.f32 %v361, %v917
        %v1052 = vadd.f32 %v362, %v920
        %v1053 = vadd.f32 %v363, %v925
        %v1054 = vadd.f32 %v364, %v928
        %v1055 = vadd.f32 %v365, %v933
        %v1056 = vadd.f32 %v366, %v936
        %v1057 = vadd.f32 %v367, %v941
        %v1058 = vadd.f32 %v368, %v944
        %v1059 = vadd.f32 %v369, %v949
        %v1060 = vadd.f32 %v370, %v952
        %v1061 = vadd.f32 %v371, %v957
        %v1062 = vadd.f32 %v372, %v960
        %v1063 = vadd.f32 %v373, %v965
        %v1064 = vadd.f32 %v374, %v968
        %v1065 = vadd.f32 %v375, %v973
        %v1066 = vadd.f32 %v376, %v976
        %v1067 = vadd.f32 %v377, %v981
        %v1068 = vadd.f32 %v378, %v984
        %v1069 = vadd.f32 %v379, %v989
        %v1070 = vadd.f32 %v380, %v992
        %v1071 = vadd.f32 %v381, %v997
        %v1072 = vadd.f32 %v382, %v1000
        %v1073 = vadd.f32 %v383, %v1005
        %v1074 = vadd.f32 %v384, %v1008
        %vm1075 = vcmask 523264
        %1076 = vst.msk [vmem:[#allocation2] sm:$0xff] %vm1075, %v1011
        %1077 = vst.msk [vmem:[#allocation2 + $0x8] sm:$0xff] %vm1075, %v1012
        %1078 = vst.msk [vmem:[#allocation2 + $0x10] sm:$0xff] %vm1075, %v1013
        %1079 = vst.msk [vmem:[#allocation2 + $0x18] sm:$0xff] %vm1075, %v1014
        %1080 = vst.msk [vmem:[#allocation2 + $0x20] sm:$0xff] %vm1075, %v1015
        %1081 = vst.msk [vmem:[#allocation2 + $0x28] sm:$0xff] %vm1075, %v1016
        %1082 = vst.msk [vmem:[#allocation2 + $0x30] sm:$0xff] %vm1075, %v1017
        %1083 = vst.msk [vmem:[#allocation2 + $0x38] sm:$0xff] %vm1075, %v1018
        %1084 = vst.msk [vmem:[#allocation2 + $0x40] sm:$0xff] %vm1075, %v1019
        %1085 = vst.msk [vmem:[#allocation2 + $0x48] sm:$0xff] %vm1075, %v1020
        %1086 = vst.msk [vmem:[#allocation2 + $0x50] sm:$0xff] %vm1075, %v1021
        %1087 = vst.msk [vmem:[#allocation2 + $0x58] sm:$0xff] %vm1075, %v1022
        %1088 = vst.msk [vmem:[#allocation2 + $0x60] sm:$0xff] %vm1075, %v1023
        %1089 = vst.msk [vmem:[#allocation2 + $0x68] sm:$0xff] %vm1075, %v1024
        %1090 = vst.msk [vmem:[#allocation2 + $0x70] sm:$0xff] %vm1075, %v1025
        %1091 = vst.msk [vmem:[#allocation2 + $0x78] sm:$0xff] %vm1075, %v1026
        %1092 = vst.msk [vmem:[#allocation2 + $0x80] sm:$0xff] %vm1075, %v1027
        %1093 = vst.msk [vmem:[#allocation2 + $0x88] sm:$0xff] %vm1075, %v1028
        %1094 = vst.msk [vmem:[#allocation2 + $0x90] sm:$0xff] %vm1075, %v1029
        %1095 = vst.msk [vmem:[#allocation2 + $0x98] sm:$0xff] %vm1075, %v1030
        %1096 = vst.msk [vmem:[#allocation2 + $0xa0] sm:$0xff] %vm1075, %v1031
        %1097 = vst.msk [vmem:[#allocation2 + $0xa8] sm:$0xff] %vm1075, %v1032
        %1098 = vst.msk [vmem:[#allocation2 + $0xb0] sm:$0xff] %vm1075, %v1033
        %1099 = vst.msk [vmem:[#allocation2 + $0xb8] sm:$0xff] %vm1075, %v1034
        %1100 = vst.msk [vmem:[#allocation2 + $0xc0] sm:$0xff] %vm1075, %v1035
        %1101 = vst.msk [vmem:[#allocation2 + $0xc8] sm:$0xff] %vm1075, %v1036
        %1102 = vst.msk [vmem:[#allocation2 + $0xd0] sm:$0xff] %vm1075, %v1037
        %1103 = vst.msk [vmem:[#allocation2 + $0xd8] sm:$0xff] %vm1075, %v1038
        %1104 = vst.msk [vmem:[#allocation2 + $0xe0] sm:$0xff] %vm1075, %v1039
        %1105 = vst.msk [vmem:[#allocation2 + $0xe8] sm:$0xff] %vm1075, %v1040
        %1106 = vst.msk [vmem:[#allocation2 + $0xf0] sm:$0xff] %vm1075, %v1041
        %1107 = vst.msk [vmem:[#allocation2 + $0xf8] sm:$0xff] %vm1075, %v1042
        %1108 = vst.msk [vmem:[#allocation2 + $0x100] sm:$0xff] %vm1075, %v1043
        %1109 = vst.msk [vmem:[#allocation2 + $0x108] sm:$0xff] %vm1075, %v1044
        %1110 = vst.msk [vmem:[#allocation2 + $0x110] sm:$0xff] %vm1075, %v1045
        %1111 = vst.msk [vmem:[#allocation2 + $0x118] sm:$0xff] %vm1075, %v1046
        %1112 = vst.msk [vmem:[#allocation2 + $0x120] sm:$0xff] %vm1075, %v1047
        %1113 = vst.msk [vmem:[#allocation2 + $0x128] sm:$0xff] %vm1075, %v1048
        %1114 = vst.msk [vmem:[#allocation2 + $0x130] sm:$0xff] %vm1075, %v1049
        %1115 = vst.msk [vmem:[#allocation2 + $0x138] sm:$0xff] %vm1075, %v1050
        %1116 = vst.msk [vmem:[#allocation2 + $0x140] sm:$0xff] %vm1075, %v1051
        %1117 = vst.msk [vmem:[#allocation2 + $0x148] sm:$0xff] %vm1075, %v1052
        %1118 = vst.msk [vmem:[#allocation2 + $0x150] sm:$0xff] %vm1075, %v1053
        %1119 = vst.msk [vmem:[#allocation2 + $0x158] sm:$0xff] %vm1075, %v1054
        %1120 = vst.msk [vmem:[#allocation2 + $0x160] sm:$0xff] %vm1075, %v1055
        %1121 = vst.msk [vmem:[#allocation2 + $0x168] sm:$0xff] %vm1075, %v1056
        %1122 = vst.msk [vmem:[#allocation2 + $0x170] sm:$0xff] %vm1075, %v1057
        %1123 = vst.msk [vmem:[#allocation2 + $0x178] sm:$0xff] %vm1075, %v1058
        %1124 = vst.msk [vmem:[#allocation2 + $0x180] sm:$0xff] %vm1075, %v1059
        %1125 = vst.msk [vmem:[#allocation2 + $0x188] sm:$0xff] %vm1075, %v1060
        %1126 = vst.msk [vmem:[#allocation2 + $0x190] sm:$0xff] %vm1075, %v1061
        %1127 = vst.msk [vmem:[#allocation2 + $0x198] sm:$0xff] %vm1075, %v1062
        %1128 = vst.msk [vmem:[#allocation2 + $0x1a0] sm:$0xff] %vm1075, %v1063
        %1129 = vst.msk [vmem:[#allocation2 + $0x1a8] sm:$0xff] %vm1075, %v1064
        %1130 = vst.msk [vmem:[#allocation2 + $0x1b0] sm:$0xff] %vm1075, %v1065
        %1131 = vst.msk [vmem:[#allocation2 + $0x1b8] sm:$0xff] %vm1075, %v1066
        %1132 = vst.msk [vmem:[#allocation2 + $0x1c0] sm:$0xff] %vm1075, %v1067
        %1133 = vst.msk [vmem:[#allocation2 + $0x1c8] sm:$0xff] %vm1075, %v1068
        %1134 = vst.msk [vmem:[#allocation2 + $0x1d0] sm:$0xff] %vm1075, %v1069
        %1135 = vst.msk [vmem:[#allocation2 + $0x1d8] sm:$0xff] %vm1075, %v1070
        %1136 = vst.msk [vmem:[#allocation2 + $0x1e0] sm:$0xff] %vm1075, %v1071
        %1137 = vst.msk [vmem:[#allocation2 + $0x1e8] sm:$0xff] %vm1075, %v1072
        %1138 = vst.msk [vmem:[#allocation2 + $0x1f0] sm:$0xff] %vm1075, %v1073
        %1139 = vst.msk [vmem:[#allocation2 + $0x1f8] sm:$0xff] %vm1075, %v1074
        // Predicated region
        $region37: #{_conv2d_impl.1} parent=31 // pred_check
          %p1140 = pneg %p252
        $region38: #{_conv2d_impl.1} parent=31 // pred_check_branch
          %1142 = sbr.rel (%p1140) target = $region40
        $region39: #{_conv2d_impl.1} parent=31 // pred_region
          %v1143 = vld [vmem:[#allocation2] sm:$0xff]
          %v1144 = vld [vmem:[#allocation2 + $0x8] sm:$0xff]
          %v1145 = vld [vmem:[#allocation2 + $0x10] sm:$0xff]
          %v1146 = vld [vmem:[#allocation2 + $0x18] sm:$0xff]
          %v1147 = vld [vmem:[#allocation2 + $0x20] sm:$0xff]
          %v1148 = vld [vmem:[#allocation2 + $0x28] sm:$0xff]
          %v1149 = vld [vmem:[#allocation2 + $0x30] sm:$0xff]
          %v1150 = vld [vmem:[#allocation2 + $0x38] sm:$0xff]
          %v1151 = vld [vmem:[#allocation2 + $0x40] sm:$0xff]
          %v1152 = vld [vmem:[#allocation2 + $0x48] sm:$0xff]
          %v1153 = vld [vmem:[#allocation2 + $0x50] sm:$0xff]
          %v1154 = vld [vmem:[#allocation2 + $0x58] sm:$0xff]
          %v1155 = vld [vmem:[#allocation2 + $0x60] sm:$0xff]
          %v1156 = vld [vmem:[#allocation2 + $0x68] sm:$0xff]
          %v1157 = vld [vmem:[#allocation2 + $0x70] sm:$0xff]
          %v1158 = vld [vmem:[#allocation2 + $0x78] sm:$0xff]
          %v1159 = vld [vmem:[#allocation2 + $0x80] sm:$0xff]
          %v1160 = vld [vmem:[#allocation2 + $0x88] sm:$0xff]
          %v1161 = vld [vmem:[#allocation2 + $0x90] sm:$0xff]
          %v1162 = vld [vmem:[#allocation2 + $0x98] sm:$0xff]
          %v1163 = vld [vmem:[#allocation2 + $0xa0] sm:$0xff]
          %v1164 = vld [vmem:[#allocation2 + $0xa8] sm:$0xff]
          %v1165 = vld [vmem:[#allocation2 + $0xb0] sm:$0xff]
          %v1166 = vld [vmem:[#allocation2 + $0xb8] sm:$0xff]
          %v1167 = vld [vmem:[#allocation2 + $0xc0] sm:$0xff]
          %v1168 = vld [vmem:[#allocation2 + $0xc8] sm:$0xff]
          %v1169 = vld [vmem:[#allocation2 + $0xd0] sm:$0xff]
          %v1170 = vld [vmem:[#allocation2 + $0xd8] sm:$0xff]
          %v1171 = vld [vmem:[#allocation2 + $0xe0] sm:$0xff]
          %v1172 = vld [vmem:[#allocation2 + $0xe8] sm:$0xff]
          %v1173 = vld [vmem:[#allocation2 + $0xf0] sm:$0xff]
          %v1174 = vld [vmem:[#allocation2 + $0xf8] sm:$0xff]
          %v1175 = vld [vmem:[#allocation2 + $0x100] sm:$0xff]
          %v1176 = vld [vmem:[#allocation2 + $0x108] sm:$0xff]
          %v1177 = vld [vmem:[#allocation2 + $0x110] sm:$0xff]
          %v1178 = vld [vmem:[#allocation2 + $0x118] sm:$0xff]
          %v1179 = vld [vmem:[#allocation2 + $0x120] sm:$0xff]
          %v1180 = vld [vmem:[#allocation2 + $0x128] sm:$0xff]
          %v1181 = vld [vmem:[#allocation2 + $0x130] sm:$0xff]
          %v1182 = vld [vmem:[#allocation2 + $0x138] sm:$0xff]
          %v1183 = vld [vmem:[#allocation2 + $0x140] sm:$0xff]
          %v1184 = vld [vmem:[#allocation2 + $0x148] sm:$0xff]
          %v1185 = vld [vmem:[#allocation2 + $0x150] sm:$0xff]
          %v1186 = vld [vmem:[#allocation2 + $0x158] sm:$0xff]
          %v1187 = vld [vmem:[#allocation2 + $0x160] sm:$0xff]
          %v1188 = vld [vmem:[#allocation2 + $0x168] sm:$0xff]
          %v1189 = vld [vmem:[#allocation2 + $0x170] sm:$0xff]
          %v1190 = vld [vmem:[#allocation2 + $0x178] sm:$0xff]
          %v1191 = vld [vmem:[#allocation2 + $0x180] sm:$0xff]
          %v1192 = vld [vmem:[#allocation2 + $0x188] sm:$0xff]
          %v1193 = vld [vmem:[#allocation2 + $0x190] sm:$0xff]
          %v1194 = vld [vmem:[#allocation2 + $0x198] sm:$0xff]
          %v1195 = vld [vmem:[#allocation2 + $0x1a0] sm:$0xff]
          %v1196 = vld [vmem:[#allocation2 + $0x1a8] sm:$0xff]
          %v1197 = vld [vmem:[#allocation2 + $0x1b0] sm:$0xff]
          %v1198 = vld [vmem:[#allocation2 + $0x1b8] sm:$0xff]
          %v1199 = vld [vmem:[#allocation2 + $0x1c0] sm:$0xff]
          %v1200 = vld [vmem:[#allocation2 + $0x1c8] sm:$0xff]
          %v1201 = vld [vmem:[#allocation2 + $0x1d0] sm:$0xff]
          %v1202 = vld [vmem:[#allocation2 + $0x1d8] sm:$0xff]
          %v1203 = vld [vmem:[#allocation2 + $0x1e0] sm:$0xff]
          %v1204 = vld [vmem:[#allocation2 + $0x1e8] sm:$0xff]
          %v1205 = vld [vmem:[#allocation2 + $0x1f0] sm:$0xff]
          %v1206 = vld [vmem:[#allocation2 + $0x1f8] sm:$0xff]
          %v1207 = vld [vmem:[%s249] sm:$0x1]
          %v1209 = vlaneseq
          %v1210 = vshrl.u32 %v1209, 7
          %v1211 = vsub.s32 0, %v1210
          %v1212 = vrot.slane %v1207, %v1211
          %v1214 = vadd.f32 %v1143, %v1212
          %v1215 = vadd.f32 %v1144, %v1212
          %v1216 = vadd.f32 %v1145, %v1212
          %v1217 = vadd.f32 %v1146, %v1212
          %v1218 = vadd.f32 %v1147, %v1212
          %v1219 = vadd.f32 %v1148, %v1212
          %v1220 = vadd.f32 %v1149, %v1212
          %v1221 = vadd.f32 %v1150, %v1212
          %v1222 = vadd.f32 %v1151, %v1212
          %v1223 = vadd.f32 %v1152, %v1212
          %v1224 = vadd.f32 %v1153, %v1212
          %v1225 = vadd.f32 %v1154, %v1212
          %v1226 = vadd.f32 %v1155, %v1212
          %v1227 = vadd.f32 %v1156, %v1212
          %v1228 = vadd.f32 %v1157, %v1212
          %v1229 = vadd.f32 %v1158, %v1212
          %v1230 = vadd.f32 %v1159, %v1212
          %v1231 = vadd.f32 %v1160, %v1212
          %v1232 = vadd.f32 %v1161, %v1212
          %v1233 = vadd.f32 %v1162, %v1212
          %v1234 = vadd.f32 %v1163, %v1212
          %v1235 = vadd.f32 %v1164, %v1212
          %v1236 = vadd.f32 %v1165, %v1212
          %v1237 = vadd.f32 %v1166, %v1212
          %v1238 = vadd.f32 %v1167, %v1212
          %v1239 = vadd.f32 %v1168, %v1212
          %v1240 = vadd.f32 %v1169, %v1212
          %v1241 = vadd.f32 %v1170, %v1212
          %v1242 = vadd.f32 %v1171, %v1212
          %v1243 = vadd.f32 %v1172, %v1212
          %v1244 = vadd.f32 %v1173, %v1212
          %v1245 = vadd.f32 %v1174, %v1212
          %v1246 = vadd.f32 %v1175, %v1212
          %v1247 = vadd.f32 %v1176, %v1212
          %v1248 = vadd.f32 %v1177, %v1212
          %v1249 = vadd.f32 %v1178, %v1212
          %v1250 = vadd.f32 %v1179, %v1212
          %v1251 = vadd.f32 %v1180, %v1212
          %v1252 = vadd.f32 %v1181, %v1212
          %v1253 = vadd.f32 %v1182, %v1212
          %v1254 = vadd.f32 %v1183, %v1212
          %v1255 = vadd.f32 %v1184, %v1212
          %v1256 = vadd.f32 %v1185, %v1212
          %v1257 = vadd.f32 %v1186, %v1212
          %v1258 = vadd.f32 %v1187, %v1212
          %v1259 = vadd.f32 %v1188, %v1212
          %v1260 = vadd.f32 %v1189, %v1212
          %v1261 = vadd.f32 %v1190, %v1212
          %v1262 = vadd.f32 %v1191, %v1212
          %v1263 = vadd.f32 %v1192, %v1212
          %v1264 = vadd.f32 %v1193, %v1212
          %v1265 = vadd.f32 %v1194, %v1212
          %v1266 = vadd.f32 %v1195, %v1212
          %v1267 = vadd.f32 %v1196, %v1212
          %v1268 = vadd.f32 %v1197, %v1212
          %v1269 = vadd.f32 %v1198, %v1212
          %v1270 = vadd.f32 %v1199, %v1212
          %v1271 = vadd.f32 %v1200, %v1212
          %v1272 = vadd.f32 %v1201, %v1212
          %v1273 = vadd.f32 %v1202, %v1212
          %v1274 = vadd.f32 %v1203, %v1212
          %v1275 = vadd.f32 %v1204, %v1212
          %v1276 = vadd.f32 %v1205, %v1212
          %v1277 = vadd.f32 %v1206, %v1212
          %1278 = vst.msk [vmem:[%s228] sm:$0xff] %vm1075, %v1214
          %1279 = vst.msk [vmem:[%s228 + $0x8] sm:$0xff] %vm1075, %v1215
          %1280 = vst.msk [vmem:[%s228 + $0x10] sm:$0xff] %vm1075, %v1216
          %1281 = vst.msk [vmem:[%s228 + $0x18] sm:$0xff] %vm1075, %v1217
          %1282 = vst.msk [vmem:[%s228 + $0x20] sm:$0xff] %vm1075, %v1218
          %1283 = vst.msk [vmem:[%s228 + $0x28] sm:$0xff] %vm1075, %v1219
          %1284 = vst.msk [vmem:[%s228 + $0x30] sm:$0xff] %vm1075, %v1220
          %1285 = vst.msk [vmem:[%s228 + $0x38] sm:$0xff] %vm1075, %v1221
          %1286 = vst.msk [vmem:[%s228 + $0x40] sm:$0xff] %vm1075, %v1222
          %1287 = vst.msk [vmem:[%s228 + $0x48] sm:$0xff] %vm1075, %v1223
          %1288 = vst.msk [vmem:[%s228 + $0x50] sm:$0xff] %vm1075, %v1224
          %1289 = vst.msk [vmem:[%s228 + $0x58] sm:$0xff] %vm1075, %v1225
          %1290 = vst.msk [vmem:[%s228 + $0x60] sm:$0xff] %vm1075, %v1226
          %1291 = vst.msk [vmem:[%s228 + $0x68] sm:$0xff] %vm1075, %v1227
          %1292 = vst.msk [vmem:[%s228 + $0x70] sm:$0xff] %vm1075, %v1228
          %1293 = vst.msk [vmem:[%s228 + $0x78] sm:$0xff] %vm1075, %v1229
          %1294 = vst.msk [vmem:[%s228 + $0x80] sm:$0xff] %vm1075, %v1230
          %1295 = vst.msk [vmem:[%s228 + $0x88] sm:$0xff] %vm1075, %v1231
          %1296 = vst.msk [vmem:[%s228 + $0x90] sm:$0xff] %vm1075, %v1232
          %1297 = vst.msk [vmem:[%s228 + $0x98] sm:$0xff] %vm1075, %v1233
          %1298 = vst.msk [vmem:[%s228 + $0xa0] sm:$0xff] %vm1075, %v1234
          %1299 = vst.msk [vmem:[%s228 + $0xa8] sm:$0xff] %vm1075, %v1235
          %1300 = vst.msk [vmem:[%s228 + $0xb0] sm:$0xff] %vm1075, %v1236
          %1301 = vst.msk [vmem:[%s228 + $0xb8] sm:$0xff] %vm1075, %v1237
          %1302 = vst.msk [vmem:[%s228 + $0xc0] sm:$0xff] %vm1075, %v1238
          %1303 = vst.msk [vmem:[%s228 + $0xc8] sm:$0xff] %vm1075, %v1239
          %1304 = vst.msk [vmem:[%s228 + $0xd0] sm:$0xff] %vm1075, %v1240
          %1305 = vst.msk [vmem:[%s228 + $0xd8] sm:$0xff] %vm1075, %v1241
          %1306 = vst.msk [vmem:[%s228 + $0xe0] sm:$0xff] %vm1075, %v1242
          %1307 = vst.msk [vmem:[%s228 + $0xe8] sm:$0xff] %vm1075, %v1243
          %1308 = vst.msk [vmem:[%s228 + $0xf0] sm:$0xff] %vm1075, %v1244
          %1309 = vst.msk [vmem:[%s228 + $0xf8] sm:$0xff] %vm1075, %v1245
          %1310 = vst.msk [vmem:[%s228 + $0x100] sm:$0xff] %vm1075, %v1246
          %1311 = vst.msk [vmem:[%s228 + $0x108] sm:$0xff] %vm1075, %v1247
          %1312 = vst.msk [vmem:[%s228 + $0x110] sm:$0xff] %vm1075, %v1248
          %1313 = vst.msk [vmem:[%s228 + $0x118] sm:$0xff] %vm1075, %v1249
          %1314 = vst.msk [vmem:[%s228 + $0x120] sm:$0xff] %vm1075, %v1250
          %1315 = vst.msk [vmem:[%s228 + $0x128] sm:$0xff] %vm1075, %v1251
          %1316 = vst.msk [vmem:[%s228 + $0x130] sm:$0xff] %vm1075, %v1252
          %1317 = vst.msk [vmem:[%s228 + $0x138] sm:$0xff] %vm1075, %v1253
          %1318 = vst.msk [vmem:[%s228 + $0x140] sm:$0xff] %vm1075, %v1254
          %1319 = vst.msk [vmem:[%s228 + $0x148] sm:$0xff] %vm1075, %v1255
          %1320 = vst.msk [vmem:[%s228 + $0x150] sm:$0xff] %vm1075, %v1256
          %1321 = vst.msk [vmem:[%s228 + $0x158] sm:$0xff] %vm1075, %v1257
          %1322 = vst.msk [vmem:[%s228 + $0x160] sm:$0xff] %vm1075, %v1258
          %1323 = vst.msk [vmem:[%s228 + $0x168] sm:$0xff] %vm1075, %v1259
          %1324 = vst.msk [vmem:[%s228 + $0x170] sm:$0xff] %vm1075, %v1260
          %1325 = vst.msk [vmem:[%s228 + $0x178] sm:$0xff] %vm1075, %v1261
          %1326 = vst.msk [vmem:[%s228 + $0x180] sm:$0xff] %vm1075, %v1262
          %1327 = vst.msk [vmem:[%s228 + $0x188] sm:$0xff] %vm1075, %v1263
          %1328 = vst.msk [vmem:[%s228 + $0x190] sm:$0xff] %vm1075, %v1264
          %1329 = vst.msk [vmem:[%s228 + $0x198] sm:$0xff] %vm1075, %v1265
          %1330 = vst.msk [vmem:[%s228 + $0x1a0] sm:$0xff] %vm1075, %v1266
          %1331 = vst.msk [vmem:[%s228 + $0x1a8] sm:$0xff] %vm1075, %v1267
          %1332 = vst.msk [vmem:[%s228 + $0x1b0] sm:$0xff] %vm1075, %v1268
          %1333 = vst.msk [vmem:[%s228 + $0x1b8] sm:$0xff] %vm1075, %v1269
          %1334 = vst.msk [vmem:[%s228 + $0x1c0] sm:$0xff] %vm1075, %v1270
          %1335 = vst.msk [vmem:[%s228 + $0x1c8] sm:$0xff] %vm1075, %v1271
          %1336 = vst.msk [vmem:[%s228 + $0x1d0] sm:$0xff] %vm1075, %v1272
          %1337 = vst.msk [vmem:[%s228 + $0x1d8] sm:$0xff] %vm1075, %v1273
          %1338 = vst.msk [vmem:[%s228 + $0x1e0] sm:$0xff] %vm1075, %v1274
          %1339 = vst.msk [vmem:[%s228 + $0x1e8] sm:$0xff] %vm1075, %v1275
          %1340 = vst.msk [vmem:[%s228 + $0x1f0] sm:$0xff] %vm1075, %v1276
          %1341 = vst.msk [vmem:[%s228 + $0x1f8] sm:$0xff] %vm1075, %v1277
        $region40: #{_conv2d_impl.1} parent=31 // pred_fallthru
          _
        %s1342 = sand.u32 %s128, 1
        %s1343 = scalar_lea.sflag [#allocation4], %s1342
        %s1344 = sand.u32 %s128, 1
        %s1345 = smul.addr %s1344, 512
        %s1346 = scalar_lea.vmem [#allocation3], %s1345
        // Predicated region
        $region41: #{_conv2d_impl.1} parent=31 // pred_check
          %p1347 = pneg %p138
        $region42: #{_conv2d_impl.1} parent=31 // pred_check_branch
          %1349 = sbr.rel (%p1347) target = $region44
        $region43: #{_conv2d_impl.1} parent=31 // pred_region
          %s1350 = smul.u32 64, %s22
          %s1352 = ssub.s32 8192, 8192
          %1353 = vsyncadd %s1343, %s1352
          %s1354 = sadd.s32 %s23, %s1350
          %s1355 = smul.addr %s1354, 128
          %s1356 = scalar_lea.hbm %s3, %s1355
          %s1357 = sshll.u32 %s1346, 4
          %s1358 = int_to_ptr.vmem [resolvable:$true] %s1357
          %1363 = dma.vmem_to_hbm [thread:$0]  %s1358, 8192, %s1356, %s1343, 128, 128, 8
        $region44: #{_conv2d_impl.1} parent=31 // pred_fallthru
          _
      $region32: #{_conv2d_impl.1} parent=5 // pred_fallthru
        _
      %p1364 = scmp.le.s32.totalorder 2, %s12
      // Predicated region
      $region45: #{_conv2d_impl.1} parent=5 // pred_check
        %p1365 = pneg %p1364
      $region46: #{_conv2d_impl.1} parent=5 // pred_check_branch
        %1367 = sbr.rel (%p1365) target = $region48
      $region47: #{_conv2d_impl.1} parent=5 // pred_region
        %s1368 = ssub.s32 %s12, 2
        // Predicated region
        $region49: #{_conv2d_impl.1} parent=47 // pred_check
          %p1369 = pneg %p144
        $region50: #{_conv2d_impl.1} parent=47 // pred_check_branch
          %1371 = sbr.rel (%p1369) target = $region52
        $region51: #{_conv2d_impl.1} parent=47 // pred_region
          %s1372 = sand.u32 %s129, 1
          %s1373 = scalar_lea.sflag [#allocation4], %s1372
          %s1374 = sand.u32 %s129, 1
          %s1375 = smul.addr %s1374, 512
          %s1376 = scalar_lea.vmem [#allocation3], %s1375
          %1377 = dma.done %s1373, 8192
        $region52: #{_conv2d_impl.1} parent=47 // pred_fallthru
          _
      $region48: #{_conv2d_impl.1} parent=5 // pred_fallthru
        _
    $region6: #{_conv2d_impl.1} parent=1 // loop_footer
      %s16 = sadd.s32 1, %s12
    $region7: #{_conv2d_impl.1} parent=1 // loop_footer_branch
      %11 = sbr.rel target = $region3
    $region8: #{_conv2d_impl.1} parent=1 // loop_exit
      _
    %1378 = vsyncpa [#allocation4], 1
    %s1379 = scalar_lea.sflag [#allocation4], 1
    %1380 = vsyncpa %s1379, 1

</llo_original>
